<compile_context>
chip_gen: v6e
topology: v6e:2x2x1
jax: 0.10.0
libtpu: 0.0.40
codegen_flags: <defaults>
</compile_context>

<pallas_src>
import functools

import jax
import jax.numpy as jnp
from jax.experimental import pallas as pl
from jax.experimental.pallas import tpu as pltpu


def _round_up(x, m):
    return (x + m - 1) // m * m


# ----------------------------------------------------------------------------
# Kernel 1: fused conv2d + bias + ReLU (+ 2x2 maxpool).
# The conv is one dense matmul per pool-window phase with the whole KH*KW*Cin
# contraction collapsed onto K; the pool is the max over the 4 phases.
# ----------------------------------------------------------------------------
def _conv_fused_kernel(p_ref, w_ref, b_ref, o_ref, *, phases):
    """p_ref: (phases, tm, K) im2col patches (one set per pool-window phase).
    w_ref: (K, Cout_p) reshaped + lane-padded conv weight.
    b_ref: (1, Cout_p) lane-padded bias.
    o_ref: (tm, Cout_p) output tile (pooled spatial positions if phases == 4)."""
    w = w_ref[...]
    y = jnp.dot(p_ref[0], w, preferred_element_type=jnp.float32)
    for ph in range(1, phases):
        y = jnp.maximum(
            y, jnp.dot(p_ref[ph], w, preferred_element_type=jnp.float32))
    # max-over-phases then bias+ReLU == pool(relu(conv+bias)): bias is
    # phase-invariant and ReLU is monotonic.
    o_ref[...] = jnp.maximum(y + b_ref[...], 0.0).astype(o_ref.dtype)


def conv2d_relu_pool_nhwc(x, w, b, *, stride, padding, pool):
    """x: (N,H,W,Cin); w: (KH,KW,Cin,Cout); b: (Cout,).
    Returns relu(conv(x)+b), 2x2-max-pooled if pool=True, in NHWC."""
    N, H, W, Cin = x.shape
    KH, KW, _, Cout = w.shape
    xp = jnp.pad(x, ((0, 0), (padding, padding), (padding, padding), (0, 0)))
    Ho = (H + 2 * padding - KH) // stride + 1
    Wo = (W + 2 * padding - KW) // stride + 1

    if pool:
        Hout, Wout = Ho // 2, Wo // 2
        phase_off = ((0, 0), (0, 1), (1, 0), (1, 1))   # (dh, dw) in the 2x2 window
        step = 2 * stride
    else:
        Hout, Wout = Ho, Wo
        phase_off = ((0, 0),)
        step = stride
    phases = len(phase_off)
    M = N * Hout * Wout
    K = KH * KW * Cin

    # Layout glue (XLA): one im2col patch matrix per pool-window phase with all
    # KH*KW taps concatenated onto the contraction dim.
    # TODO(synk): build the patches from the padded input inside the kernel
    # (VMEM-resident shifted windows) to avoid the KH*KW-times im2col HBM
    # blow-up at large resolutions.
    phase_mats = []
    for (dh, dw) in phase_off:
        taps = []
        for kh in range(KH):
            for kw in range(KW):
                hs = dh * stride + kh
                ws = dw * stride + kw
                sl = xp[:, hs:hs + step * (Hout - 1) + 1:step,
                           ws:ws + step * (Wout - 1) + 1:step, :]
                taps.append(sl.reshape(M, Cin))
        phase_mats.append(jnp.concatenate(taps, axis=-1))      # (M, K)
    patches = jnp.stack(phase_mats, axis=0)                    # (phases, M, K)

    # Lane-pad Cout to a multiple of 128 so stores / MXU N-dim are dense.
    Cout_p = _round_up(Cout, 128)
    w2 = jnp.pad(w.reshape(K, Cout), ((0, 0), (0, Cout_p - Cout)))
    b2 = jnp.pad(b, (0, Cout_p - Cout)).reshape(1, Cout_p)

    # Row tiling: parallel grid axis (megacore on v7x) + bounded VMEM blocks.
    tm = min(512, _round_up(M, 8))
    M_pad = _round_up(M, tm)
    if M_pad != M:
        patches = jnp.pad(patches, ((0, 0), (0, M_pad - M), (0, 0)))

    out = pl.pallas_call(
        functools.partial(_conv_fused_kernel, phases=phases),
        out_shape=jax.ShapeDtypeStruct((M_pad, Cout_p), x.dtype),
        grid_spec=pltpu.PrefetchScalarGridSpec(
            num_scalar_prefetch=0,
            grid=(M_pad // tm,),
            in_specs=[
                pl.BlockSpec((phases, tm, K), lambda i: (0, i, 0)),
                pl.BlockSpec((K, Cout_p), lambda i: (0, 0)),     # weight resident
                pl.BlockSpec((1, Cout_p), lambda i: (0, 0)),     # bias resident
            ],
            out_specs=pl.BlockSpec((tm, Cout_p), lambda i: (i, 0)),
        ),
        compiler_params=pltpu.CompilerParams(
            dimension_semantics=("parallel",)),
    )(patches, w2, b2)

    return out[:M, :Cout].reshape(N, Hout, Wout, Cout)


# ----------------------------------------------------------------------------
# Kernel 2: tiled linear (+ optional ReLU) with K-reduction accumulator.
# ----------------------------------------------------------------------------
def _linear_kernel(x_ref, w_ref, b_ref, o_ref, acc_ref, *, relu):
    k = pl.program_id(2)

    @pl.when(k == 0)
    def _():
        acc_ref[...] = jnp.zeros_like(acc_ref)

    acc_ref[...] += jnp.dot(x_ref[...], w_ref[...],
                            preferred_element_type=jnp.float32)

    @pl.when(k == pl.num_programs(2) - 1)
    def _():
        y = acc_ref[...] + b_ref[...]
        if relu:
            y = jnp.maximum(y, 0.0)
        o_ref[...] = y.astype(o_ref.dtype)


def linear(x, w, b, *, relu):
    """x: (B, K); w: (K, O); b: (O,).  Tiled (B, O, K) matmul + bias (+ReLU)."""
    B, K = x.shape
    O = w.shape[1]

    tb = min(256, _round_up(B, 8))
    to = min(512, _round_up(O, 128))
    tk = min(512, _round_up(K, 128))
    B_pad, O_pad, K_pad = _round_up(B, tb), _round_up(O, to), _round_up(K, tk)

    xp = jnp.pad(x, ((0, B_pad - B), (0, K_pad - K)))
    wp = jnp.pad(w, ((0, K_pad - K), (0, O_pad - O)))
    bp = jnp.pad(b, (0, O_pad - O)).reshape(1, O_pad)

    out = pl.pallas_call(
        functools.partial(_linear_kernel, relu=relu),
        out_shape=jax.ShapeDtypeStruct((B_pad, O_pad), x.dtype),
        grid_spec=pltpu.PrefetchScalarGridSpec(
            num_scalar_prefetch=0,
            grid=(B_pad // tb, O_pad // to, K_pad // tk),
            in_specs=[
                pl.BlockSpec((tb, tk), lambda i, j, k: (i, k)),
                pl.BlockSpec((tk, to), lambda i, j, k: (k, j)),
                pl.BlockSpec((1, to), lambda i, j, k: (0, j)),
            ],
            out_specs=pl.BlockSpec((tb, to), lambda i, j, k: (i, j)),
            scratch_shapes=[pltpu.VMEM((tb, to), jnp.float32)],
        ),
        compiler_params=pltpu.CompilerParams(
            dimension_semantics=("parallel", "parallel", "arbitrary")),
    )(xp, wp, bp)
    return out[:B, :O]


# ----------------------------------------------------------------------------
# Parameter init (deterministic, PyTorch-default-style uniform(+-1/sqrt(fan_in))).
# fc weights are stored with rows in torch flatten order (C, H, W).
# ----------------------------------------------------------------------------
def init_cnn_params(key, *, input_channels, conv_layers, fc_layers, output_size,
                    image_height, image_width, use_pooling):
    params = {"conv": [], "fc": [], "out": None}
    in_c, H, W = input_channels, image_height, image_width

    for cfg in conv_layers:
        k, s, p = cfg["kernel_size"], cfg["stride"], cfg["padding"]
        out_c = cfg["out_channels"]
        key, kw_, kb_ = jax.random.split(key, 3)
        fan_in = in_c * k * k
        bound = 1.0 / float(fan_in) ** 0.5
        w = jax.random.uniform(kw_, (k, k, in_c, out_c), jnp.float32, -bound, bound)
        b = jax.random.uniform(kb_, (out_c,), jnp.float32, -bound, bound)
        params["conv"].append((w, b, s, p))
        H = (H + 2 * p - k) // s + 1
        W = (W + 2 * p - k) // s + 1
        if use_pooling:
            H, W = H // 2, W // 2
        in_c = out_c

    params["conv_out_chw"] = (in_c, H, W)
    in_features = in_c * H * W
    for units in fc_layers:
        key, kw_, kb_ = jax.random.split(key, 3)
        bound = 1.0 / float(in_features) ** 0.5
        w = jax.random.uniform(kw_, (in_features, units), jnp.float32, -bound, bound)
        b = jax.random.uniform(kb_, (units,), jnp.float32, -bound, bound)
        params["fc"].append((w, b))
        in_features = units

    key, kw_, kb_ = jax.random.split(key, 3)
    bound = 1.0 / float(in_features) ** 0.5
    w = jax.random.uniform(kw_, (in_features, output_size), jnp.float32, -bound, bound)
    b = jax.random.uniform(kb_, (output_size,), jnp.float32, -bound, bound)
    params["out"] = (w, b)
    return params


def prepare_fast_params(params):
    """One-time static weight transform: permute the first FC layer's rows from
    torch (C,H,W) flatten order to NHWC (H,W,C) order, so the conv->FC handoff
    needs no runtime activation transpose (item folded into 'init')."""
    C, H, W = params["conv_out_chw"]

    def permute_rows(wmat):
        out_dim = wmat.shape[1]
        return (wmat.reshape(C, H, W, out_dim)
                    .transpose(1, 2, 0, 3)
                    .reshape(H * W * C, out_dim))

    fast = {"conv": params["conv"], "fc": list(params["fc"]), "out": params["out"]}
    if fast["fc"]:
        w1, b1 = fast["fc"][0]
        fast["fc"][0] = (permute_rows(w1), b1)
    else:
        wo, bo = fast["out"]
        fast["out"] = (permute_rows(wo), bo)
    return fast


# ----------------------------------------------------------------------------
# Forward passes.
# ----------------------------------------------------------------------------
def cnn_forward(fast_params, x_nchw, *, use_pooling):
    """Pallas forward: activations stay NHWC end-to-end; torch-order flatten is
    folded into the pre-permuted first FC weight."""
    x = jnp.transpose(x_nchw, (0, 2, 3, 1))            # NCHW -> NHWC (input only)
    for (w, b, s, p) in fast_params["conv"]:
        x = conv2d_relu_pool_nhwc(x, w, b, stride=s, padding=p, pool=use_pooling)
    x = x.reshape(x.shape[0], -1)                      # NHWC flatten, no transpose
    for (w, b) in fast_params["fc"]:
        x = linear(x, w, b, relu=True)
    w, b = fast_params["out"]
    return linear(x, w, b, relu=False)


def cnn_forward_ref(params, x_nchw, *, use_pooling):
    """Pure-JAX reference mirroring torch semantics (flatten in C,H,W order)."""
    x = jnp.transpose(x_nchw, (0, 2, 3, 1))
    for (w, b, s, p) in params["conv"]:
        x = jax.lax.conv_general_dilated(
            x, w, (s, s), [(p, p), (p, p)],
            dimension_numbers=("NHWC", "HWIO", "NHWC"))
        x = jax.nn.relu(x + b)
        if use_pooling:
            N, H, W, C = x.shape
            x = x[:, :H // 2 * 2, :W // 2 * 2, :]
            x = x.reshape(N, H // 2, 2, W // 2, 2, C).max(axis=(2, 4))
    x = jnp.transpose(x, (0, 3, 1, 2)).reshape(x.shape[0], -1)   # torch flatten
    for (w, b) in params["fc"]:
        x = jax.nn.relu(x @ w + b)
    w, b = params["out"]
    return x @ w + b


if __name__ == "__main__":
    # Small config consistent with CNNGenerator.__init__:
    batch_size = 2
    input_channels = 4
    image_height = image_width = 16
    conv_layers = [
        {"out_channels": 8, "kernel_size": 3, "stride": 1, "padding": 1},
        {"out_channels": 16, "kernel_size": 3, "stride": 1, "padding": 1},
    ]
    fc_layers = [32]
    output_size = 10
    use_pooling = True

    key = jax.random.PRNGKey(0)
    key, pkey, xkey = jax.random.split(key, 3)
    params = init_cnn_params(
        pkey, input_channels=input_channels, conv_layers=conv_layers,
        fc_layers=fc_layers, output_size=output_size,
        image_height=image_height, image_width=image_width,
        use_pooling=use_pooling)
    fast_params = prepare_fast_params(params)

    x = jax.random.normal(
        xkey, (batch_size, input_channels, image_height, image_width), jnp.float32)

    fwd = jax.jit(lambda xin: cnn_forward(fast_params, xin, use_pooling=use_pooling))
    out = jax.block_until_ready(fwd(x))

    ref = cnn_forward_ref(params, x, use_pooling=use_pooling)
    assert out.shape == (batch_size, output_size)
    assert jnp.allclose(out, ref, atol=1e-4, rtol=1e-4), "Pallas output mismatch vs reference"

    print("KERNEL_OK")
</pallas_src>

<mosaic_0001>
module attributes {stable_mosaic.version = 11 : i64} {
  func.func @_conv_fused_kernel(%arg0: i32, %arg1: memref<4x128x36xf32, #tpu.memory_space<vmem>>, %arg2: memref<36x128xf32, #tpu.memory_space<vmem>>, %arg3: memref<1x128xf32, #tpu.memory_space<vmem>>, %arg4: memref<128x128xf32, #tpu.memory_space<vmem>>) attributes {dimension_semantics = [#tpu.dimension_semantics<parallel>], iteration_bounds = array<i64: 1>, scalar_prefetch = 0 : i64, scratch_operands = 0 : i64, tpu.core_type = #tpu.core_type<tc>, window_params = [{transform_indices = @transform_0, window_bounds = array<i64: 4, 128, 36>}, {pipeline_mode = #tpu.pipeline_mode<synchronous>, transform_indices = @transform_1, window_bounds = array<i64: 36, 128>}, {pipeline_mode = #tpu.pipeline_mode<synchronous>, transform_indices = @transform_2, window_bounds = array<i64: 1, 128>}, {transform_indices = @transform_3, window_bounds = array<i64: 128, 128>}]} {
    %c0 = arith.constant 0 : index
    %c0_0 = arith.constant 0 : index
    %0 = vector.load %arg2[%c0, %c0_0] : memref<36x128xf32, #tpu.memory_space<vmem>>, vector<36x128xf32>
    %c0_1 = arith.constant 0 : index
    %c0_2 = arith.constant 0 : index
    %c0_3 = arith.constant 0 : index
    %1 = vector.load %arg1[%c0_1, %c0_2, %c0_3] : memref<4x128x36xf32, #tpu.memory_space<vmem>>, vector<1x128x36xf32>
    %2 = vector.shape_cast %1 : vector<1x128x36xf32> to vector<128x36xf32>
    %cst = arith.constant dense<0.000000e+00> : vector<128x128xf32>
    %3 = tpu.matmul %2, %0, %cst {dimension_numbers = #tpu.dot_dimension_numbers<[1], [0], [0], [1], [0, 0, 1, 1], [], []>} : vector<128x36xf32>, vector<36x128xf32>, vector<128x128xf32> -> vector<128x128xf32>
    %c1 = arith.constant 1 : index
    %c0_4 = arith.constant 0 : index
    %c0_5 = arith.constant 0 : index
    %4 = vector.load %arg1[%c1, %c0_4, %c0_5] : memref<4x128x36xf32, #tpu.memory_space<vmem>>, vector<1x128x36xf32>
    %5 = vector.shape_cast %4 : vector<1x128x36xf32> to vector<128x36xf32>
    %cst_6 = arith.constant dense<0.000000e+00> : vector<128x128xf32>
    %6 = tpu.matmul %5, %0, %cst_6 {dimension_numbers = #tpu.dot_dimension_numbers<[1], [0], [0], [1], [0, 0, 1, 1], [], []>} : vector<128x36xf32>, vector<36x128xf32>, vector<128x128xf32> -> vector<128x128xf32>
    %7 = arith.maximumf %3, %6 : vector<128x128xf32>
    %c2 = arith.constant 2 : index
    %c0_7 = arith.constant 0 : index
    %c0_8 = arith.constant 0 : index
    %8 = vector.load %arg1[%c2, %c0_7, %c0_8] : memref<4x128x36xf32, #tpu.memory_space<vmem>>, vector<1x128x36xf32>
    %9 = vector.shape_cast %8 : vector<1x128x36xf32> to vector<128x36xf32>
    %cst_9 = arith.constant dense<0.000000e+00> : vector<128x128xf32>
    %10 = tpu.matmul %9, %0, %cst_9 {dimension_numbers = #tpu.dot_dimension_numbers<[1], [0], [0], [1], [0, 0, 1, 1], [], []>} : vector<128x36xf32>, vector<36x128xf32>, vector<128x128xf32> -> vector<128x128xf32>
    %11 = arith.maximumf %7, %10 : vector<128x128xf32>
    %c3 = arith.constant 3 : index
    %c0_10 = arith.constant 0 : index
    %c0_11 = arith.constant 0 : index
    %12 = vector.load %arg1[%c3, %c0_10, %c0_11] : memref<4x128x36xf32, #tpu.memory_space<vmem>>, vector<1x128x36xf32>
    %13 = vector.shape_cast %12 : vector<1x128x36xf32> to vector<128x36xf32>
    %cst_12 = arith.constant dense<0.000000e+00> : vector<128x128xf32>
    %14 = tpu.matmul %13, %0, %cst_12 {dimension_numbers = #tpu.dot_dimension_numbers<[1], [0], [0], [1], [0, 0, 1, 1], [], []>} : vector<128x36xf32>, vector<36x128xf32>, vector<128x128xf32> -> vector<128x128xf32>
    %15 = arith.maximumf %11, %14 : vector<128x128xf32>
    %c0_13 = arith.constant 0 : index
    %c0_14 = arith.constant 0 : index
    %16 = vector.load %arg3[%c0_13, %c0_14] : memref<1x128xf32, #tpu.memory_space<vmem>>, vector<1x128xf32>
    %17 = vector.broadcast %16 : vector<1x128xf32> to vector<128x128xf32>
    %18 = arith.addf %15, %17 : vector<128x128xf32>
    %cst_15 = arith.constant 0.000000e+00 : f32
    %19 = vector.broadcast %cst_15 : f32 to vector<128x128xf32>
    %20 = arith.maximumf %18, %19 : vector<128x128xf32>
    %c0_16 = arith.constant 0 : index
    %c0_17 = arith.constant 0 : index
    %21 = vector.load %arg4[%c0_16, %c0_17] : memref<128x128xf32, #tpu.memory_space<vmem>>, vector<128x128xf32>
    tpu.vector_store %arg4[%c0_16, %c0_17], %20 {strides = array<i32>} : memref<128x128xf32, #tpu.memory_space<vmem>>, vector<128x128xf32>,
    return
  }
  func.func @transform_0(%arg0: i32) -> (i32, i32, i32) {
    %c0_i32 = arith.constant 0 : i32
    %c0_i32_0 = arith.constant 0 : i32
    %c0_i32_1 = arith.constant 0 : i32
    return %c0_i32, %arg0, %c0_i32_0 : i32, i32, i32
  }
  func.func @transform_1(%arg0: i32) -> (i32, i32) {
    %c0_i32 = arith.constant 0 : i32
    %c0_i32_0 = arith.constant 0 : i32
    %c0_i32_1 = arith.constant 0 : i32
    return %c0_i32, %c0_i32_0 : i32, i32
  }
  func.func @transform_2(%arg0: i32) -> (i32, i32) {
    %c0_i32 = arith.constant 0 : i32
    %c0_i32_0 = arith.constant 0 : i32
    %c0_i32_1 = arith.constant 0 : i32
    return %c0_i32, %c0_i32_0 : i32, i32
  }
  func.func @transform_3(%arg0: i32) -> (i32, i32) {
    %c0_i32 = arith.constant 0 : i32
    %c0_i32_0 = arith.constant 0 : i32
    return %arg0, %c0_i32 : i32, i32
  }
}

module attributes {stable_mosaic.version = 11 : i64} {
  func.func @_conv_fused_kernel(%arg0: i32, %arg1: memref<4x32x72xf32, #tpu.memory_space<vmem>>, %arg2: memref<72x128xf32, #tpu.memory_space<vmem>>, %arg3: memref<1x128xf32, #tpu.memory_space<vmem>>, %arg4: memref<32x128xf32, #tpu.memory_space<vmem>>) attributes {dimension_semantics = [#tpu.dimension_semantics<parallel>], iteration_bounds = array<i64: 1>, scalar_prefetch = 0 : i64, scratch_operands = 0 : i64, tpu.core_type = #tpu.core_type<tc>, window_params = [{transform_indices = @transform_0, window_bounds = array<i64: 4, 32, 72>}, {pipeline_mode = #tpu.pipeline_mode<synchronous>, transform_indices = @transform_1, window_bounds = array<i64: 72, 128>}, {pipeline_mode = #tpu.pipeline_mode<synchronous>, transform_indices = @transform_2, window_bounds = array<i64: 1, 128>}, {transform_indices = @transform_3, window_bounds = array<i64: 32, 128>}]} {
    %c0 = arith.constant 0 : index
    %c0_0 = arith.constant 0 : index
    %0 = vector.load %arg2[%c0, %c0_0] : memref<72x128xf32, #tpu.memory_space<vmem>>, vector<72x128xf32>
    %c0_1 = arith.constant 0 : index
    %c0_2 = arith.constant 0 : index
    %c0_3 = arith.constant 0 : index
    %1 = vector.load %arg1[%c0_1, %c0_2, %c0_3] : memref<4x32x72xf32, #tpu.memory_space<vmem>>, vector<1x32x72xf32>
    %2 = vector.shape_cast %1 : vector<1x32x72xf32> to vector<32x72xf32>
    %cst = arith.constant dense<0.000000e+00> : vector<32x128xf32>
    %3 = tpu.matmul %2, %0, %cst {dimension_numbers = #tpu.dot_dimension_numbers<[1], [0], [0], [1], [0, 0, 1, 1], [], []>} : vector<32x72xf32>, vector<72x128xf32>, vector<32x128xf32> -> vector<32x128xf32>
    %c1 = arith.constant 1 : index
    %c0_4 = arith.constant 0 : index
    %c0_5 = arith.constant 0 : index
    %4 = vector.load %arg1[%c1, %c0_4, %c0_5] : memref<4x32x72xf32, #tpu.memory_space<vmem>>, vector<1x32x72xf32>
    %5 = vector.shape_cast %4 : vector<1x32x72xf32> to vector<32x72xf32>
    %cst_6 = arith.constant dense<0.000000e+00> : vector<32x128xf32>
    %6 = tpu.matmul %5, %0, %cst_6 {dimension_numbers = #tpu.dot_dimension_numbers<[1], [0], [0], [1], [0, 0, 1, 1], [], []>} : vector<32x72xf32>, vector<72x128xf32>, vector<32x128xf32> -> vector<32x128xf32>
    %7 = arith.maximumf %3, %6 : vector<32x128xf32>
    %c2 = arith.constant 2 : index
    %c0_7 = arith.constant 0 : index
    %c0_8 = arith.constant 0 : index
    %8 = vector.load %arg1[%c2, %c0_7, %c0_8] : memref<4x32x72xf32, #tpu.memory_space<vmem>>, vector<1x32x72xf32>
    %9 = vector.shape_cast %8 : vector<1x32x72xf32> to vector<32x72xf32>
    %cst_9 = arith.constant dense<0.000000e+00> : vector<32x128xf32>
    %10 = tpu.matmul %9, %0, %cst_9 {dimension_numbers = #tpu.dot_dimension_numbers<[1], [0], [0], [1], [0, 0, 1, 1], [], []>} : vector<32x72xf32>, vector<72x128xf32>, vector<32x128xf32> -> vector<32x128xf32>
    %11 = arith.maximumf %7, %10 : vector<32x128xf32>
    %c3 = arith.constant 3 : index
    %c0_10 = arith.constant 0 : index
    %c0_11 = arith.constant 0 : index
    %12 = vector.load %arg1[%c3, %c0_10, %c0_11] : memref<4x32x72xf32, #tpu.memory_space<vmem>>, vector<1x32x72xf32>
    %13 = vector.shape_cast %12 : vector<1x32x72xf32> to vector<32x72xf32>
    %cst_12 = arith.constant dense<0.000000e+00> : vector<32x128xf32>
    %14 = tpu.matmul %13, %0, %cst_12 {dimension_numbers = #tpu.dot_dimension_numbers<[1], [0], [0], [1], [0, 0, 1, 1], [], []>} : vector<32x72xf32>, vector<72x128xf32>, vector<32x128xf32> -> vector<32x128xf32>
    %15 = arith.maximumf %11, %14 : vector<32x128xf32>
    %c0_13 = arith.constant 0 : index
    %c0_14 = arith.constant 0 : index
    %16 = vector.load %arg3[%c0_13, %c0_14] : memref<1x128xf32, #tpu.memory_space<vmem>>, vector<1x128xf32>
    %17 = vector.broadcast %16 : vector<1x128xf32> to vector<32x128xf32>
    %18 = arith.addf %15, %17 : vector<32x128xf32>
    %cst_15 = arith.constant 0.000000e+00 : f32
    %19 = vector.broadcast %cst_15 : f32 to vector<32x128xf32>
    %20 = arith.maximumf %18, %19 : vector<32x128xf32>
    %c0_16 = arith.constant 0 : index
    %c0_17 = arith.constant 0 : index
    %21 = vector.load %arg4[%c0_16, %c0_17] : memref<32x128xf32, #tpu.memory_space<vmem>>, vector<32x128xf32>
    tpu.vector_store %arg4[%c0_16, %c0_17], %20 {strides = array<i32>} : memref<32x128xf32, #tpu.memory_space<vmem>>, vector<32x128xf32>,
    return
  }
  func.func @transform_0(%arg0: i32) -> (i32, i32, i32) {
    %c0_i32 = arith.constant 0 : i32
    %c0_i32_0 = arith.constant 0 : i32
    %c0_i32_1 = arith.constant 0 : i32
    return %c0_i32, %arg0, %c0_i32_0 : i32, i32, i32
  }
  func.func @transform_1(%arg0: i32) -> (i32, i32) {
    %c0_i32 = arith.constant 0 : i32
    %c0_i32_0 = arith.constant 0 : i32
    %c0_i32_1 = arith.constant 0 : i32
    return %c0_i32, %c0_i32_0 : i32, i32
  }
  func.func @transform_2(%arg0: i32) -> (i32, i32) {
    %c0_i32 = arith.constant 0 : i32
    %c0_i32_0 = arith.constant 0 : i32
    %c0_i32_1 = arith.constant 0 : i32
    return %c0_i32, %c0_i32_0 : i32, i32
  }
  func.func @transform_3(%arg0: i32) -> (i32, i32) {
    %c0_i32 = arith.constant 0 : i32
    %c0_i32_0 = arith.constant 0 : i32
    return %arg0, %c0_i32 : i32, i32
  }
}

module attributes {stable_mosaic.version = 11 : i64} {
  func.func @_linear_kernel(%arg0: i32, %arg1: i32, %arg2: i32, %arg3: memref<8x256xf32, #tpu.memory_space<vmem>>, %arg4: memref<256x128xf32, #tpu.memory_space<vmem>>, %arg5: memref<1x128xf32, #tpu.memory_space<vmem>>, %arg6: memref<8x128xf32, #tpu.memory_space<vmem>>, %arg7: memref<8x128xf32, #tpu.memory_space<vmem>>) attributes {dimension_semantics = [#tpu.dimension_semantics<parallel>, #tpu.dimension_semantics<parallel>, #tpu.dimension_semantics<arbitrary>], iteration_bounds = array<i64: 1, 1, 1>, scalar_prefetch = 0 : i64, scratch_operands = 1 : i64, tpu.core_type = #tpu.core_type<tc>, window_params = [{transform_indices = @transform_0, window_bounds = array<i64: 8, 256>}, {transform_indices = @transform_1, window_bounds = array<i64: 256, 128>}, {transform_indices = @transform_2, window_bounds = array<i64: 1, 128>}, {transform_indices = @transform_3, window_bounds = array<i64: 8, 128>}]} {
    %c0_i32 = arith.constant 0 : i32
    %0 = arith.cmpi eq, %arg2, %c0_i32 : i32
    %1 = arith.extui %0 : i1 to i32
    %c0_i32_0 = arith.constant 0 : i32
    %2 = arith.cmpi ne, %1, %c0_i32_0 : i32
    scf.if %2 {
      %cst_10 = arith.constant 0.000000e+00 : f32
      %12 = vector.broadcast %cst_10 : f32 to vector<8x128xf32>
      %c0_11 = arith.constant 0 : index
      %c0_12 = arith.constant 0 : index
      %13 = vector.load %arg7[%c0_11, %c0_12] : memref<8x128xf32, #tpu.memory_space<vmem>>, vector<8x128xf32>
      tpu.vector_store %arg7[%c0_11, %c0_12], %12 {strides = array<i32>} : memref<8x128xf32, #tpu.memory_space<vmem>>, vector<8x128xf32>,
    } else {
    }
    %c0 = arith.constant 0 : index
    %c0_1 = arith.constant 0 : index
    %3 = vector.load %arg7[%c0, %c0_1] : memref<8x128xf32, #tpu.memory_space<vmem>>, vector<8x128xf32>
    %c0_2 = arith.constant 0 : index
    %c0_3 = arith.constant 0 : index
    %4 = vector.load %arg3[%c0_2, %c0_3] : memref<8x256xf32, #tpu.memory_space<vmem>>, vector<8x256xf32>
    %c0_4 = arith.constant 0 : index
    %c0_5 = arith.constant 0 : index
    %5 = vector.load %arg4[%c0_4, %c0_5] : memref<256x128xf32, #tpu.memory_space<vmem>>, vector<256x128xf32>
    %cst = arith.constant dense<0.000000e+00> : vector<8x128xf32>
    %6 = tpu.matmul %4, %5, %cst {dimension_numbers = #tpu.dot_dimension_numbers<[1], [0], [0], [1], [0, 0, 1, 1], [], []>} : vector<8x256xf32>, vector<256x128xf32>, vector<8x128xf32> -> vector<8x128xf32>
    %7 = arith.addf %3, %6 : vector<8x128xf32>
    %c0_6 = arith.constant 0 : index
    %c0_7 = arith.constant 0 : index
    %8 = vector.load %arg7[%c0_6, %c0_7] : memref<8x128xf32, #tpu.memory_space<vmem>>, vector<8x128xf32>
    tpu.vector_store %arg7[%c0_6, %c0_7], %7 {strides = array<i32>} : memref<8x128xf32, #tpu.memory_space<vmem>>, vector<8x128xf32>,
    %c0_i32_8 = arith.constant 0 : i32
    %9 = arith.cmpi eq, %arg2, %c0_i32_8 : i32
    %10 = arith.extui %9 : i1 to i32
    %c0_i32_9 = arith.constant 0 : i32
    %11 = arith.cmpi ne, %10, %c0_i32_9 : i32
    scf.if %11 {
      %c0_10 = arith.constant 0 : index
      %c0_11 = arith.constant 0 : index
      %12 = vector.load %arg7[%c0_10, %c0_11] : memref<8x128xf32, #tpu.memory_space<vmem>>, vector<8x128xf32>
      %c0_12 = arith.constant 0 : index
      %c0_13 = arith.constant 0 : index
      %13 = vector.load %arg5[%c0_12, %c0_13] : memref<1x128xf32, #tpu.memory_space<vmem>>, vector<1x128xf32>
      %14 = vector.broadcast %13 : vector<1x128xf32> to vector<8x128xf32>
      %15 = arith.addf %12, %14 : vector<8x128xf32>
      %cst_14 = arith.constant 0.000000e+00 : f32
      %16 = vector.broadcast %cst_14 : f32 to vector<8x128xf32>
      %17 = arith.maximumf %15, %16 : vector<8x128xf32>
      %c0_15 = arith.constant 0 : index
      %c0_16 = arith.constant 0 : index
      %18 = vector.load %arg6[%c0_15, %c0_16] : memref<8x128xf32, #tpu.memory_space<vmem>>, vector<8x128xf32>
      tpu.vector_store %arg6[%c0_15, %c0_16], %17 {strides = array<i32>} : memref<8x128xf32, #tpu.memory_space<vmem>>, vector<8x128xf32>,
    } else {
    }
    return
  }
  func.func @transform_0(%arg0: i32, %arg1: i32, %arg2: i32) -> (i32, i32) {
    %c0_i32 = arith.constant 0 : i32
    return %arg0, %arg2 : i32, i32
  }
  func.func @transform_1(%arg0: i32, %arg1: i32, %arg2: i32) -> (i32, i32) {
    %c0_i32 = arith.constant 0 : i32
    return %arg2, %arg1 : i32, i32
  }
  func.func @transform_2(%arg0: i32, %arg1: i32, %arg2: i32) -> (i32, i32) {
    %c0_i32 = arith.constant 0 : i32
    %c0_i32_0 = arith.constant 0 : i32
    return %c0_i32, %arg1 : i32, i32
  }
  func.func @transform_3(%arg0: i32, %arg1: i32, %arg2: i32) -> (i32, i32) {
    %c0_i32 = arith.constant 0 : i32
    return %arg0, %arg1 : i32, i32
  }
}

module attributes {stable_mosaic.version = 11 : i64} {
  func.func @_linear_kernel(%arg0: i32, %arg1: i32, %arg2: i32, %arg3: memref<8x128xf32, #tpu.memory_space<vmem>>, %arg4: memref<128x128xf32, #tpu.memory_space<vmem>>, %arg5: memref<1x128xf32, #tpu.memory_space<vmem>>, %arg6: memref<8x128xf32, #tpu.memory_space<vmem>>, %arg7: memref<8x128xf32, #tpu.memory_space<vmem>>) attributes {dimension_semantics = [#tpu.dimension_semantics<parallel>, #tpu.dimension_semantics<parallel>, #tpu.dimension_semantics<arbitrary>], iteration_bounds = array<i64: 1, 1, 1>, scalar_prefetch = 0 : i64, scratch_operands = 1 : i64, tpu.core_type = #tpu.core_type<tc>, window_params = [{transform_indices = @transform_0, window_bounds = array<i64: 8, 128>}, {transform_indices = @transform_1, window_bounds = array<i64: 128, 128>}, {transform_indices = @transform_2, window_bounds = array<i64: 1, 128>}, {transform_indices = @transform_3, window_bounds = array<i64: 8, 128>}]} {
    %c0_i32 = arith.constant 0 : i32
    %0 = arith.cmpi eq, %arg2, %c0_i32 : i32
    %1 = arith.extui %0 : i1 to i32
    %c0_i32_0 = arith.constant 0 : i32
    %2 = arith.cmpi ne, %1, %c0_i32_0 : i32
    scf.if %2 {
      %cst_10 = arith.constant 0.000000e+00 : f32
      %12 = vector.broadcast %cst_10 : f32 to vector<8x128xf32>
      %c0_11 = arith.constant 0 : index
      %c0_12 = arith.constant 0 : index
      %13 = vector.load %arg7[%c0_11, %c0_12] : memref<8x128xf32, #tpu.memory_space<vmem>>, vector<8x128xf32>
      tpu.vector_store %arg7[%c0_11, %c0_12], %12 {strides = array<i32>} : memref<8x128xf32, #tpu.memory_space<vmem>>, vector<8x128xf32>,
    } else {
    }
    %c0 = arith.constant 0 : index
    %c0_1 = arith.constant 0 : index
    %3 = vector.load %arg7[%c0, %c0_1] : memref<8x128xf32, #tpu.memory_space<vmem>>, vector<8x128xf32>
    %c0_2 = arith.constant 0 : index
    %c0_3 = arith.constant 0 : index
    %4 = vector.load %arg3[%c0_2, %c0_3] : memref<8x128xf32, #tpu.memory_space<vmem>>, vector<8x128xf32>
    %c0_4 = arith.constant 0 : index
    %c0_5 = arith.constant 0 : index
    %5 = vector.load %arg4[%c0_4, %c0_5] : memref<128x128xf32, #tpu.memory_space<vmem>>, vector<128x128xf32>
    %cst = arith.constant dense<0.000000e+00> : vector<8x128xf32>
    %6 = tpu.matmul %4, %5, %cst {dimension_numbers = #tpu.dot_dimension_numbers<[1], [0], [0], [1], [0, 0, 1, 1], [], []>} : vector<8x128xf32>, vector<128x128xf32>, vector<8x128xf32> -> vector<8x128xf32>
    %7 = arith.addf %3, %6 : vector<8x128xf32>
    %c0_6 = arith.constant 0 : index
    %c0_7 = arith.constant 0 : index
    %8 = vector.load %arg7[%c0_6, %c0_7] : memref<8x128xf32, #tpu.memory_space<vmem>>, vector<8x128xf32>
    tpu.vector_store %arg7[%c0_6, %c0_7], %7 {strides = array<i32>} : memref<8x128xf32, #tpu.memory_space<vmem>>, vector<8x128xf32>,
    %c0_i32_8 = arith.constant 0 : i32
    %9 = arith.cmpi eq, %arg2, %c0_i32_8 : i32
    %10 = arith.extui %9 : i1 to i32
    %c0_i32_9 = arith.constant 0 : i32
    %11 = arith.cmpi ne, %10, %c0_i32_9 : i32
    scf.if %11 {
      %c0_10 = arith.constant 0 : index
      %c0_11 = arith.constant 0 : index
      %12 = vector.load %arg7[%c0_10, %c0_11] : memref<8x128xf32, #tpu.memory_space<vmem>>, vector<8x128xf32>
      %c0_12 = arith.constant 0 : index
      %c0_13 = arith.constant 0 : index
      %13 = vector.load %arg5[%c0_12, %c0_13] : memref<1x128xf32, #tpu.memory_space<vmem>>, vector<1x128xf32>
      %14 = vector.broadcast %13 : vector<1x128xf32> to vector<8x128xf32>
      %15 = arith.addf %12, %14 : vector<8x128xf32>
      %c0_14 = arith.constant 0 : index
      %c0_15 = arith.constant 0 : index
      %16 = vector.load %arg6[%c0_14, %c0_15] : memref<8x128xf32, #tpu.memory_space<vmem>>, vector<8x128xf32>
      tpu.vector_store %arg6[%c0_14, %c0_15], %15 {strides = array<i32>} : memref<8x128xf32, #tpu.memory_space<vmem>>, vector<8x128xf32>,
    } else {
    }
    return
  }
  func.func @transform_0(%arg0: i32, %arg1: i32, %arg2: i32) -> (i32, i32) {
    %c0_i32 = arith.constant 0 : i32
    return %arg0, %arg2 : i32, i32
  }
  func.func @transform_1(%arg0: i32, %arg1: i32, %arg2: i32) -> (i32, i32) {
    %c0_i32 = arith.constant 0 : i32
    return %arg2, %arg1 : i32, i32
  }
  func.func @transform_2(%arg0: i32, %arg1: i32, %arg2: i32) -> (i32, i32) {
    %c0_i32 = arith.constant 0 : i32
    %c0_i32_0 = arith.constant 0 : i32
    return %c0_i32, %arg1 : i32, i32
  }
  func.func @transform_3(%arg0: i32, %arg1: i32, %arg2: i32) -> (i32, i32) {
    %c0_i32 = arith.constant 0 : i32
    return %arg0, %arg1 : i32, i32
  }
}

</mosaic_0001>

<llo_original>
// kernel: _lambda_.4
$region0: #{_lambda_.4}
  #allocation0 [shape = 'u32[]', space=smem, size = 0x4, offset = 0x4, fixed_abs, tag = 'smem constant byte address 0x4 - core index']
  #allocation1 [shape = 'u32[144,128]{1,0:T(1,128)}', space=vmem, size = 0x12000, scoped, tag = 'internal scratch']
  %s0 = inlined_call_operand.vmem [shape: f32[4,128,36], index: 0, kind: input, shape index: {}]
  %s1 = inlined_call_operand.vmem [shape: f32[36,128], index: 1, kind: input, shape index: {}]
  %s2 = inlined_call_operand.vmem [shape: f32[1,128], index: 2, kind: input, shape index: {}]
  %s3 = inlined_call_operand.vmem [shape: f32[128,128], index: 3, kind: output, shape index: {}]
  %s4 = sld [smem:[#allocation0]]
  $region22: #{_lambda_.4} parent=0
    _
  %s6 = ssub.s32 1, %s4
  %s7 = scalar_select 0, %s6, %s4
  // Predicated region
  $region2: #{_lambda_.4} parent=0 // pred_check
    _
  $region3: #{_lambda_.4} parent=0 // pred_check_branch
    %9 = sbr.rel (0) target = $region5
  $region4: #{_lambda_.4} parent=0 // pred_region
    _
  $region5: #{_lambda_.4} parent=0 // pred_fallthru
    _
  // Predicated region
  $region6: #{_lambda_.4} parent=0 // pred_check
    _
  $region7: #{_lambda_.4} parent=0 // pred_check_branch
    %11 = sbr.rel (0) target = $region9
  $region8: #{_lambda_.4} parent=0 // pred_region
    _
  $region9: #{_lambda_.4} parent=0 // pred_fallthru
    _
  // Predicated region
  $region10: #{_lambda_.4} parent=0 // pred_check
    _
  $region11: #{_lambda_.4} parent=0 // pred_check_branch
    %13 = sbr.rel (0) target = $region13
  $region12: #{_lambda_.4} parent=0 // pred_region
    _
  $region13: #{_lambda_.4} parent=0 // pred_fallthru
    _
  %v14 = vld [vmem:[%s1] sm:$0xff]
  %v15 = vld [vmem:[%s1 + $0x8] sm:$0xff]
  %v16 = vld [vmem:[%s1 + $0x10] sm:$0xff]
  %v17 = vld [vmem:[%s1 + $0x18] sm:$0xff]
  %v18 = vld [vmem:[%s1 + $0x20] sm:$0xf]
  %v19 = vld [vmem:[%s0] sm:$0xff]
  %v20 = vld [vmem:[%s0 + $0x8] sm:$0xff]
  %v21 = vld [vmem:[%s0 + $0x10] sm:$0xff]
  %v22 = vld [vmem:[%s0 + $0x18] sm:$0xff]
  %v23 = vld [vmem:[%s0 + $0x20] sm:$0xff]
  %v24 = vld [vmem:[%s0 + $0x28] sm:$0xff]
  %v25 = vld [vmem:[%s0 + $0x30] sm:$0xff]
  %v26 = vld [vmem:[%s0 + $0x38] sm:$0xff]
  %v27 = vld [vmem:[%s0 + $0x40] sm:$0xff]
  %v28 = vld [vmem:[%s0 + $0x48] sm:$0xff]
  %v29 = vld [vmem:[%s0 + $0x50] sm:$0xff]
  %v30 = vld [vmem:[%s0 + $0x58] sm:$0xff]
  %v31 = vld [vmem:[%s0 + $0x60] sm:$0xff]
  %v32 = vld [vmem:[%s0 + $0x68] sm:$0xff]
  %v33 = vld [vmem:[%s0 + $0x70] sm:$0xff]
  %v34 = vld [vmem:[%s0 + $0x78] sm:$0xff]
  %vm35 = vcmask 293888
  %v37 = vsel %vm35, %v19, 0
  %v40 = vsel %vm35, %v20, 0
  %v43 = vsel %vm35, %v21, 0
  %v46 = vsel %vm35, %v22, 0
  %v49 = vsel %vm35, %v23, 0
  %v52 = vsel %vm35, %v24, 0
  %v55 = vsel %vm35, %v25, 0
  %v58 = vsel %vm35, %v26, 0
  %v61 = vsel %vm35, %v27, 0
  %v64 = vsel %vm35, %v28, 0
  %v67 = vsel %vm35, %v29, 0
  %v70 = vsel %vm35, %v30, 0
  %v73 = vsel %vm35, %v31, 0
  %v76 = vsel %vm35, %v32, 0
  %v79 = vsel %vm35, %v33, 0
  %v82 = vsel %vm35, %v34, 0
  %vm84 = vcmask 1043456
  %v86 = vsel %vm84, %v18, 0
  %88 = vmatprep.subr.mxu0 0.0
  %89 = vmatpush1.msra.mxu0 0.0
  %90 = vmatprep.subr.mxu0 0.0
  %91 = vmatpush1.msra.mxu0 0.0
  %92 = vmatprep.subr.mxu0 0.0
  %93 = vmatpush1.msra.mxu0 0.0
  %94 = vmatprep.subr.mxu0 0.0
  %95 = vmatpush1.msra.mxu0 0.0
  %96 = vmatprep.subr.mxu0 0.0
  %97 = vmatpush1.msra.mxu0 0.0
  %98 = vmatprep.subr.mxu0 0.0
  %99 = vmatpush1.msra.mxu0 0.0
  %100 = vmatprep.subr.mxu0 0.0
  %101 = vmatpush1.msra.mxu0 0.0
  %102 = vmatprep.subr.mxu0 0.0
  %103 = vmatpush1.msra.mxu0 0.0
  %104 = vmatprep.subr.mxu0 0.0
  %105 = vmatpush1.msra.mxu0 0.0
  %106 = vmatprep.subr.mxu0 0.0
  %107 = vmatpush1.msra.mxu0 0.0
  %108 = vmatprep.subr.mxu0 0.0
  %109 = vmatpush1.msra.mxu0 0.0
  %110 = vmatprep.subr.mxu0 0.0
  %111 = vmatpush1.msra.mxu0 %v86
  %112 = vmatprep.subr.mxu0 0.0
  %113 = vmatpush1.msra.mxu0 %v17
  %114 = vmatprep.subr.mxu0 0.0
  %115 = vmatpush1.msra.mxu0 %v16
  %116 = vmatprep.subr.mxu0 0.0
  %117 = vmatpush1.msra.mxu0 %v15
  %118 = vmatprep.subr.mxu0 0.0
  %119 = vmatpush1.msra.mxu0 %v14
  %120 = vmatprep.subr.mxu0 0.0
  %121 = vmatpush2.msra.mxu0 0.0
  %122 = vmatprep.subr.mxu0 0.0
  %123 = vmatpush2.msra.mxu0 0.0
  %124 = vmatprep.subr.mxu0 0.0
  %125 = vmatpush2.msra.mxu0 0.0
  %126 = vmatprep.subr.mxu0 0.0
  %127 = vmatpush2.msra.mxu0 0.0
  %128 = vmatprep.subr.mxu0 0.0
  %129 = vmatpush2.msra.mxu0 0.0
  %130 = vmatprep.subr.mxu0 0.0
  %131 = vmatpush2.msra.mxu0 0.0
  %132 = vmatprep.subr.mxu0 0.0
  %133 = vmatpush2.msra.mxu0 0.0
  %134 = vmatprep.subr.mxu0 0.0
  %135 = vmatpush2.msra.mxu0 0.0
  %136 = vmatprep.subr.mxu0 0.0
  %137 = vmatpush2.msra.mxu0 0.0
  %138 = vmatprep.subr.mxu0 0.0
  %139 = vmatpush2.msra.mxu0 0.0
  %140 = vmatprep.subr.mxu0 0.0
  %141 = vmatpush2.msra.mxu0 0.0
  %142 = vmatprep.subr.mxu0 0.0
  %143 = vmatpush2.msra.mxu0 0.0
  %144 = vmatprep.subr.mxu0 0.0
  %145 = vmatpush2.msra.mxu0 0.0
  %146 = vmatprep.subr.mxu0 0.0
  %147 = vmatpush2.msra.mxu0 0.0
  %148 = vmatprep.subr.mxu0 0.0
  %149 = vmatpush2.msra.mxu0 0.0
  %150 = vmatprep.subr.mxu0 0.0
  %151 = vmatpush2.msra.mxu0 0.0
  %152 = vmatprep.mubr.f32.mxu0 0.0
  %153 = vmatmul.mubr.f32.gmra.mxu0 %v37
  %v154 = vpop.f32.mrf.mxu0
  %v155 = vadd.f32 0.0, %v154
  %v156 = vpop.f32.mrf.mxu0
  %157 = vmatprep.mubr.f32.mxu0 0.0
  %158 = vmatmul.mubr.f32.gmra.mxu0 %v40
  %v159 = vpop.f32.mrf.mxu0
  %v160 = vadd.f32 0.0, %v159
  %v161 = vpop.f32.mrf.mxu0
  %162 = vmatprep.mubr.f32.mxu0 0.0
  %163 = vmatmul.mubr.f32.gmra.mxu0 %v43
  %v164 = vpop.f32.mrf.mxu0
  %v165 = vadd.f32 0.0, %v164
  %v166 = vpop.f32.mrf.mxu0
  %167 = vmatprep.mubr.f32.mxu0 0.0
  %168 = vmatmul.mubr.f32.gmra.mxu0 %v46
  %v169 = vpop.f32.mrf.mxu0
  %v170 = vadd.f32 0.0, %v169
  %v171 = vpop.f32.mrf.mxu0
  %172 = vmatprep.mubr.f32.mxu0 0.0
  %173 = vmatmul.mubr.f32.gmra.mxu0 %v49
  %v174 = vpop.f32.mrf.mxu0
  %v175 = vadd.f32 0.0, %v174
  %v176 = vpop.f32.mrf.mxu0
  %177 = vmatprep.mubr.f32.mxu0 0.0
  %178 = vmatmul.mubr.f32.gmra.mxu0 %v52
  %v179 = vpop.f32.mrf.mxu0
  %v180 = vadd.f32 0.0, %v179
  %v181 = vpop.f32.mrf.mxu0
  %182 = vmatprep.mubr.f32.mxu0 0.0
  %183 = vmatmul.mubr.f32.gmra.mxu0 %v55
  %v184 = vpop.f32.mrf.mxu0
  %v185 = vadd.f32 0.0, %v184
  %v186 = vpop.f32.mrf.mxu0
  %187 = vmatprep.mubr.f32.mxu0 0.0
  %188 = vmatmul.mubr.f32.gmra.mxu0 %v58
  %v189 = vpop.f32.mrf.mxu0
  %v190 = vadd.f32 0.0, %v189
  %v191 = vpop.f32.mrf.mxu0
  %192 = vmatprep.mubr.f32.mxu0 0.0
  %193 = vmatmul.mubr.f32.gmra.mxu0 %v61
  %v194 = vpop.f32.mrf.mxu0
  %v195 = vadd.f32 0.0, %v194
  %v196 = vpop.f32.mrf.mxu0
  %197 = vmatprep.mubr.f32.mxu0 0.0
  %198 = vmatmul.mubr.f32.gmra.mxu0 %v64
  %v199 = vpop.f32.mrf.mxu0
  %v200 = vadd.f32 0.0, %v199
  %v201 = vpop.f32.mrf.mxu0
  %202 = vmatprep.mubr.f32.mxu0 0.0
  %203 = vmatmul.mubr.f32.gmra.mxu0 %v67
  %v204 = vpop.f32.mrf.mxu0
  %v205 = vadd.f32 0.0, %v204
  %v206 = vpop.f32.mrf.mxu0
  %207 = vmatprep.mubr.f32.mxu0 0.0
  %208 = vmatmul.mubr.f32.gmra.mxu0 %v70
  %v209 = vpop.f32.mrf.mxu0
  %v210 = vadd.f32 0.0, %v209
  %v211 = vpop.f32.mrf.mxu0
  %212 = vmatprep.mubr.f32.mxu0 0.0
  %213 = vmatmul.mubr.f32.gmra.mxu0 %v73
  %v214 = vpop.f32.mrf.mxu0
  %v215 = vadd.f32 0.0, %v214
  %v216 = vpop.f32.mrf.mxu0
  %217 = vmatprep.mubr.f32.mxu0 0.0
  %218 = vmatmul.mubr.f32.gmra.mxu0 %v76
  %v219 = vpop.f32.mrf.mxu0
  %v220 = vadd.f32 0.0, %v219
  %v221 = vpop.f32.mrf.mxu0
  %222 = vmatprep.mubr.f32.mxu0 0.0
  %223 = vmatmul.mubr.f32.gmra.mxu0 %v79
  %v224 = vpop.f32.mrf.mxu0
  %v225 = vadd.f32 0.0, %v224
  %v226 = vpop.f32.mrf.mxu0
  %227 = vmatprep.mubr.f32.mxu0 0.0
  %228 = vmatmul.mubr.f32.gmra.mxu0 %v82
  %v229 = vpop.f32.mrf.mxu0
  %v230 = vadd.f32 0.0, %v229
  %v231 = vpop.f32.mrf.mxu0
  %232 = vdwg.mxu0
  %s233 = scalar_lea.vmem %s0, 128
  %v234 = vld [vmem:[%s233] sm:$0xff]
  %v235 = vld [vmem:[%s233 + $0x8] sm:$0xff]
  %v236 = vld [vmem:[%s233 + $0x10] sm:$0xff]
  %v237 = vld [vmem:[%s233 + $0x18] sm:$0xff]
  %v238 = vld [vmem:[%s233 + $0x20] sm:$0xff]
  %v239 = vld [vmem:[%s233 + $0x28] sm:$0xff]
  %v240 = vld [vmem:[%s233 + $0x30] sm:$0xff]
  %v241 = vld [vmem:[%s233 + $0x38] sm:$0xff]
  %v242 = vld [vmem:[%s233 + $0x40] sm:$0xff]
  %v243 = vld [vmem:[%s233 + $0x48] sm:$0xff]
  %v244 = vld [vmem:[%s233 + $0x50] sm:$0xff]
  %v245 = vld [vmem:[%s233 + $0x58] sm:$0xff]
  %v246 = vld [vmem:[%s233 + $0x60] sm:$0xff]
  %v247 = vld [vmem:[%s233 + $0x68] sm:$0xff]
  %v248 = vld [vmem:[%s233 + $0x70] sm:$0xff]
  %v249 = vld [vmem:[%s233 + $0x78] sm:$0xff]
  %v251 = vsel %vm35, %v234, 0
  %v254 = vsel %vm35, %v235, 0
  %v257 = vsel %vm35, %v236, 0
  %v260 = vsel %vm35, %v237, 0
  %v263 = vsel %vm35, %v238, 0
  %v266 = vsel %vm35, %v239, 0
  %v269 = vsel %vm35, %v240, 0
  %v272 = vsel %vm35, %v241, 0
  %v275 = vsel %vm35, %v242, 0
  %v278 = vsel %vm35, %v243, 0
  %v281 = vsel %vm35, %v244, 0
  %v284 = vsel %vm35, %v245, 0
  %v287 = vsel %vm35, %v246, 0
  %v290 = vsel %vm35, %v247, 0
  %v293 = vsel %vm35, %v248, 0
  %v296 = vsel %vm35, %v249, 0
  %298 = vmatprep.subr.mxu0 0.0
  %299 = vmatpush1.msra.mxu0 0.0
  %300 = vmatprep.subr.mxu0 0.0
  %301 = vmatpush1.msra.mxu0 0.0
  %302 = vmatprep.subr.mxu0 0.0
  %303 = vmatpush1.msra.mxu0 0.0
  %304 = vmatprep.subr.mxu0 0.0
  %305 = vmatpush1.msra.mxu0 0.0
  %306 = vmatprep.subr.mxu0 0.0
  %307 = vmatpush1.msra.mxu0 0.0
  %308 = vmatprep.subr.mxu0 0.0
  %309 = vmatpush1.msra.mxu0 0.0
  %310 = vmatprep.subr.mxu0 0.0
  %311 = vmatpush1.msra.mxu0 0.0
  %312 = vmatprep.subr.mxu0 0.0
  %313 = vmatpush1.msra.mxu0 0.0
  %314 = vmatprep.subr.mxu0 0.0
  %315 = vmatpush1.msra.mxu0 0.0
  %316 = vmatprep.subr.mxu0 0.0
  %317 = vmatpush1.msra.mxu0 0.0
  %318 = vmatprep.subr.mxu0 0.0
  %319 = vmatpush1.msra.mxu0 0.0
  %320 = vmatprep.subr.mxu0 0.0
  %321 = vmatpush1.msra.mxu0 %v86
  %322 = vmatprep.subr.mxu0 0.0
  %323 = vmatpush1.msra.mxu0 %v17
  %324 = vmatprep.subr.mxu0 0.0
  %325 = vmatpush1.msra.mxu0 %v16
  %326 = vmatprep.subr.mxu0 0.0
  %327 = vmatpush1.msra.mxu0 %v15
  %328 = vmatprep.subr.mxu0 0.0
  %329 = vmatpush1.msra.mxu0 %v14
  %330 = vmatprep.subr.mxu0 0.0
  %331 = vmatpush2.msra.mxu0 0.0
  %332 = vmatprep.subr.mxu0 0.0
  %333 = vmatpush2.msra.mxu0 0.0
  %334 = vmatprep.subr.mxu0 0.0
  %335 = vmatpush2.msra.mxu0 0.0
  %336 = vmatprep.subr.mxu0 0.0
  %337 = vmatpush2.msra.mxu0 0.0
  %338 = vmatprep.subr.mxu0 0.0
  %339 = vmatpush2.msra.mxu0 0.0
  %340 = vmatprep.subr.mxu0 0.0
  %341 = vmatpush2.msra.mxu0 0.0
  %342 = vmatprep.subr.mxu0 0.0
  %343 = vmatpush2.msra.mxu0 0.0
  %344 = vmatprep.subr.mxu0 0.0
  %345 = vmatpush2.msra.mxu0 0.0
  %346 = vmatprep.subr.mxu0 0.0
  %347 = vmatpush2.msra.mxu0 0.0
  %348 = vmatprep.subr.mxu0 0.0
  %349 = vmatpush2.msra.mxu0 0.0
  %350 = vmatprep.subr.mxu0 0.0
  %351 = vmatpush2.msra.mxu0 0.0
  %352 = vmatprep.subr.mxu0 0.0
  %353 = vmatpush2.msra.mxu0 0.0
  %354 = vmatprep.subr.mxu0 0.0
  %355 = vmatpush2.msra.mxu0 0.0
  %356 = vmatprep.subr.mxu0 0.0
  %357 = vmatpush2.msra.mxu0 0.0
  %358 = vmatprep.subr.mxu0 0.0
  %359 = vmatpush2.msra.mxu0 0.0
  %360 = vmatprep.subr.mxu0 0.0
  %361 = vmatpush2.msra.mxu0 0.0
  %362 = vmatprep.mubr.f32.mxu0 0.0
  %363 = vmatmul.mubr.f32.gmra.mxu0 %v251
  %v364 = vpop.f32.mrf.mxu0
  %v365 = vadd.f32 0.0, %v364
  %v366 = vpop.f32.mrf.mxu0
  %367 = vmatprep.mubr.f32.mxu0 0.0
  %368 = vmatmul.mubr.f32.gmra.mxu0 %v254
  %v369 = vpop.f32.mrf.mxu0
  %v370 = vadd.f32 0.0, %v369
  %v371 = vpop.f32.mrf.mxu0
  %372 = vmatprep.mubr.f32.mxu0 0.0
  %373 = vmatmul.mubr.f32.gmra.mxu0 %v257
  %v374 = vpop.f32.mrf.mxu0
  %v375 = vadd.f32 0.0, %v374
  %v376 = vpop.f32.mrf.mxu0
  %377 = vmatprep.mubr.f32.mxu0 0.0
  %378 = vmatmul.mubr.f32.gmra.mxu0 %v260
  %v379 = vpop.f32.mrf.mxu0
  %v380 = vadd.f32 0.0, %v379
  %v381 = vpop.f32.mrf.mxu0
  %382 = vmatprep.mubr.f32.mxu0 0.0
  %383 = vmatmul.mubr.f32.gmra.mxu0 %v263
  %v384 = vpop.f32.mrf.mxu0
  %v385 = vadd.f32 0.0, %v384
  %v386 = vpop.f32.mrf.mxu0
  %387 = vmatprep.mubr.f32.mxu0 0.0
  %388 = vmatmul.mubr.f32.gmra.mxu0 %v266
  %v389 = vpop.f32.mrf.mxu0
  %v390 = vadd.f32 0.0, %v389
  %v391 = vpop.f32.mrf.mxu0
  %392 = vmatprep.mubr.f32.mxu0 0.0
  %393 = vmatmul.mubr.f32.gmra.mxu0 %v269
  %v394 = vpop.f32.mrf.mxu0
  %v395 = vadd.f32 0.0, %v394
  %v396 = vpop.f32.mrf.mxu0
  %397 = vmatprep.mubr.f32.mxu0 0.0
  %398 = vmatmul.mubr.f32.gmra.mxu0 %v272
  %v399 = vpop.f32.mrf.mxu0
  %v400 = vadd.f32 0.0, %v399
  %v401 = vpop.f32.mrf.mxu0
  %402 = vmatprep.mubr.f32.mxu0 0.0
  %403 = vmatmul.mubr.f32.gmra.mxu0 %v275
  %v404 = vpop.f32.mrf.mxu0
  %v405 = vadd.f32 0.0, %v404
  %v406 = vpop.f32.mrf.mxu0
  %407 = vmatprep.mubr.f32.mxu0 0.0
  %408 = vmatmul.mubr.f32.gmra.mxu0 %v278
  %v409 = vpop.f32.mrf.mxu0
  %v410 = vadd.f32 0.0, %v409
  %v411 = vpop.f32.mrf.mxu0
  %412 = vmatprep.mubr.f32.mxu0 0.0
  %413 = vmatmul.mubr.f32.gmra.mxu0 %v281
  %v414 = vpop.f32.mrf.mxu0
  %v415 = vadd.f32 0.0, %v414
  %v416 = vpop.f32.mrf.mxu0
  %417 = vmatprep.mubr.f32.mxu0 0.0
  %418 = vmatmul.mubr.f32.gmra.mxu0 %v284
  %v419 = vpop.f32.mrf.mxu0
  %v420 = vadd.f32 0.0, %v419
  %v421 = vpop.f32.mrf.mxu0
  %422 = vmatprep.mubr.f32.mxu0 0.0
  %423 = vmatmul.mubr.f32.gmra.mxu0 %v287
  %v424 = vpop.f32.mrf.mxu0
  %v425 = vadd.f32 0.0, %v424
  %v426 = vpop.f32.mrf.mxu0
  %427 = vmatprep.mubr.f32.mxu0 0.0
  %428 = vmatmul.mubr.f32.gmra.mxu0 %v290
  %v429 = vpop.f32.mrf.mxu0
  %v430 = vadd.f32 0.0, %v429
  %v431 = vpop.f32.mrf.mxu0
  %432 = vmatprep.mubr.f32.mxu0 0.0
  %433 = vmatmul.mubr.f32.gmra.mxu0 %v293
  %v434 = vpop.f32.mrf.mxu0
  %v435 = vadd.f32 0.0, %v434
  %v436 = vpop.f32.mrf.mxu0
  %437 = vmatprep.mubr.f32.mxu0 0.0
  %438 = vmatmul.mubr.f32.gmra.mxu0 %v296
  %v439 = vpop.f32.mrf.mxu0
  %v440 = vadd.f32 0.0, %v439
  %v441 = vpop.f32.mrf.mxu0
  %442 = vdwg.mxu0
  %v443 = vmax.f32 %v155, %v365
  %v444 = vmax.f32 %v160, %v370
  %v445 = vmax.f32 %v165, %v375
  %v446 = vmax.f32 %v170, %v380
  %v447 = vmax.f32 %v175, %v385
  %v448 = vmax.f32 %v180, %v390
  %v449 = vmax.f32 %v185, %v395
  %v450 = vmax.f32 %v190, %v400
  %v451 = vmax.f32 %v195, %v405
  %v452 = vmax.f32 %v200, %v410
  %v453 = vmax.f32 %v205, %v415
  %v454 = vmax.f32 %v210, %v420
  %v455 = vmax.f32 %v215, %v425
  %v456 = vmax.f32 %v220, %v430
  %v457 = vmax.f32 %v225, %v435
  %v458 = vmax.f32 %v230, %v440
  %s459 = scalar_lea.vmem %s0, 256
  %v460 = vld [vmem:[%s459] sm:$0xff]
  %v461 = vld [vmem:[%s459 + $0x8] sm:$0xff]
  %v462 = vld [vmem:[%s459 + $0x10] sm:$0xff]
  %v463 = vld [vmem:[%s459 + $0x18] sm:$0xff]
  %v464 = vld [vmem:[%s459 + $0x20] sm:$0xff]
  %v465 = vld [vmem:[%s459 + $0x28] sm:$0xff]
  %v466 = vld [vmem:[%s459 + $0x30] sm:$0xff]
  %v467 = vld [vmem:[%s459 + $0x38] sm:$0xff]
  %v468 = vld [vmem:[%s459 + $0x40] sm:$0xff]
  %v469 = vld [vmem:[%s459 + $0x48] sm:$0xff]
  %v470 = vld [vmem:[%s459 + $0x50] sm:$0xff]
  %v471 = vld [vmem:[%s459 + $0x58] sm:$0xff]
  %v472 = vld [vmem:[%s459 + $0x60] sm:$0xff]
  %v473 = vld [vmem:[%s459 + $0x68] sm:$0xff]
  %v474 = vld [vmem:[%s459 + $0x70] sm:$0xff]
  %v475 = vld [vmem:[%s459 + $0x78] sm:$0xff]
  %v477 = vsel %vm35, %v460, 0
  %v480 = vsel %vm35, %v461, 0
  %v483 = vsel %vm35, %v462, 0
  %v486 = vsel %vm35, %v463, 0
  %v489 = vsel %vm35, %v464, 0
  %v492 = vsel %vm35, %v465, 0
  %v495 = vsel %vm35, %v466, 0
  %v498 = vsel %vm35, %v467, 0
  %v501 = vsel %vm35, %v468, 0
  %v504 = vsel %vm35, %v469, 0
  %v507 = vsel %vm35, %v470, 0
  %v510 = vsel %vm35, %v471, 0
  %v513 = vsel %vm35, %v472, 0
  %v516 = vsel %vm35, %v473, 0
  %v519 = vsel %vm35, %v474, 0
  %v522 = vsel %vm35, %v475, 0
  %524 = vmatprep.subr.mxu0 0.0
  %525 = vmatpush1.msra.mxu0 0.0
  %526 = vmatprep.subr.mxu0 0.0
  %527 = vmatpush1.msra.mxu0 0.0
  %528 = vmatprep.subr.mxu0 0.0
  %529 = vmatpush1.msra.mxu0 0.0
  %530 = vmatprep.subr.mxu0 0.0
  %531 = vmatpush1.msra.mxu0 0.0
  %532 = vmatprep.subr.mxu0 0.0
  %533 = vmatpush1.msra.mxu0 0.0
  %534 = vmatprep.subr.mxu0 0.0
  %535 = vmatpush1.msra.mxu0 0.0
  %536 = vmatprep.subr.mxu0 0.0
  %537 = vmatpush1.msra.mxu0 0.0
  %538 = vmatprep.subr.mxu0 0.0
  %539 = vmatpush1.msra.mxu0 0.0
  %540 = vmatprep.subr.mxu0 0.0
  %541 = vmatpush1.msra.mxu0 0.0
  %542 = vmatprep.subr.mxu0 0.0
  %543 = vmatpush1.msra.mxu0 0.0
  %544 = vmatprep.subr.mxu0 0.0
  %545 = vmatpush1.msra.mxu0 0.0
  %546 = vmatprep.subr.mxu0 0.0
  %547 = vmatpush1.msra.mxu0 %v86
  %548 = vmatprep.subr.mxu0 0.0
  %549 = vmatpush1.msra.mxu0 %v17
  %550 = vmatprep.subr.mxu0 0.0
  %551 = vmatpush1.msra.mxu0 %v16
  %552 = vmatprep.subr.mxu0 0.0
  %553 = vmatpush1.msra.mxu0 %v15
  %554 = vmatprep.subr.mxu0 0.0
  %555 = vmatpush1.msra.mxu0 %v14
  %556 = vmatprep.subr.mxu0 0.0
  %557 = vmatpush2.msra.mxu0 0.0
  %558 = vmatprep.subr.mxu0 0.0
  %559 = vmatpush2.msra.mxu0 0.0
  %560 = vmatprep.subr.mxu0 0.0
  %561 = vmatpush2.msra.mxu0 0.0
  %562 = vmatprep.subr.mxu0 0.0
  %563 = vmatpush2.msra.mxu0 0.0
  %564 = vmatprep.subr.mxu0 0.0
  %565 = vmatpush2.msra.mxu0 0.0
  %566 = vmatprep.subr.mxu0 0.0
  %567 = vmatpush2.msra.mxu0 0.0
  %568 = vmatprep.subr.mxu0 0.0
  %569 = vmatpush2.msra.mxu0 0.0
  %570 = vmatprep.subr.mxu0 0.0
  %571 = vmatpush2.msra.mxu0 0.0
  %572 = vmatprep.subr.mxu0 0.0
  %573 = vmatpush2.msra.mxu0 0.0
  %574 = vmatprep.subr.mxu0 0.0
  %575 = vmatpush2.msra.mxu0 0.0
  %576 = vmatprep.subr.mxu0 0.0
  %577 = vmatpush2.msra.mxu0 0.0
  %578 = vmatprep.subr.mxu0 0.0
  %579 = vmatpush2.msra.mxu0 0.0
  %580 = vmatprep.subr.mxu0 0.0
  %581 = vmatpush2.msra.mxu0 0.0
  %582 = vmatprep.subr.mxu0 0.0
  %583 = vmatpush2.msra.mxu0 0.0
  %584 = vmatprep.subr.mxu0 0.0
  %585 = vmatpush2.msra.mxu0 0.0
  %586 = vmatprep.subr.mxu0 0.0
  %587 = vmatpush2.msra.mxu0 0.0
  %588 = vmatprep.mubr.f32.mxu0 0.0
  %589 = vmatmul.mubr.f32.gmra.mxu0 %v477
  %v590 = vpop.f32.mrf.mxu0
  %v591 = vadd.f32 0.0, %v590
  %v592 = vpop.f32.mrf.mxu0
  %593 = vmatprep.mubr.f32.mxu0 0.0
  %594 = vmatmul.mubr.f32.gmra.mxu0 %v480
  %v595 = vpop.f32.mrf.mxu0
  %v596 = vadd.f32 0.0, %v595
  %v597 = vpop.f32.mrf.mxu0
  %598 = vmatprep.mubr.f32.mxu0 0.0
  %599 = vmatmul.mubr.f32.gmra.mxu0 %v483
  %v600 = vpop.f32.mrf.mxu0
  %v601 = vadd.f32 0.0, %v600
  %v602 = vpop.f32.mrf.mxu0
  %603 = vmatprep.mubr.f32.mxu0 0.0
  %604 = vmatmul.mubr.f32.gmra.mxu0 %v486
  %v605 = vpop.f32.mrf.mxu0
  %v606 = vadd.f32 0.0, %v605
  %v607 = vpop.f32.mrf.mxu0
  %608 = vmatprep.mubr.f32.mxu0 0.0
  %609 = vmatmul.mubr.f32.gmra.mxu0 %v489
  %v610 = vpop.f32.mrf.mxu0
  %v611 = vadd.f32 0.0, %v610
  %v612 = vpop.f32.mrf.mxu0
  %613 = vmatprep.mubr.f32.mxu0 0.0
  %614 = vmatmul.mubr.f32.gmra.mxu0 %v492
  %v615 = vpop.f32.mrf.mxu0
  %v616 = vadd.f32 0.0, %v615
  %v617 = vpop.f32.mrf.mxu0
  %618 = vmatprep.mubr.f32.mxu0 0.0
  %619 = vmatmul.mubr.f32.gmra.mxu0 %v495
  %v620 = vpop.f32.mrf.mxu0
  %v621 = vadd.f32 0.0, %v620
  %v622 = vpop.f32.mrf.mxu0
  %623 = vmatprep.mubr.f32.mxu0 0.0
  %624 = vmatmul.mubr.f32.gmra.mxu0 %v498
  %v625 = vpop.f32.mrf.mxu0
  %v626 = vadd.f32 0.0, %v625
  %v627 = vpop.f32.mrf.mxu0
  %628 = vmatprep.mubr.f32.mxu0 0.0
  %629 = vmatmul.mubr.f32.gmra.mxu0 %v501
  %v630 = vpop.f32.mrf.mxu0
  %v631 = vadd.f32 0.0, %v630
  %v632 = vpop.f32.mrf.mxu0
  %633 = vmatprep.mubr.f32.mxu0 0.0
  %634 = vmatmul.mubr.f32.gmra.mxu0 %v504
  %v635 = vpop.f32.mrf.mxu0
  %v636 = vadd.f32 0.0, %v635
  %v637 = vpop.f32.mrf.mxu0
  %638 = vmatprep.mubr.f32.mxu0 0.0
  %639 = vmatmul.mubr.f32.gmra.mxu0 %v507
  %v640 = vpop.f32.mrf.mxu0
  %v641 = vadd.f32 0.0, %v640
  %v642 = vpop.f32.mrf.mxu0
  %643 = vmatprep.mubr.f32.mxu0 0.0
  %644 = vmatmul.mubr.f32.gmra.mxu0 %v510
  %v645 = vpop.f32.mrf.mxu0
  %v646 = vadd.f32 0.0, %v645
  %v647 = vpop.f32.mrf.mxu0
  %648 = vmatprep.mubr.f32.mxu0 0.0
  %649 = vmatmul.mubr.f32.gmra.mxu0 %v513
  %v650 = vpop.f32.mrf.mxu0
  %v651 = vadd.f32 0.0, %v650
  %v652 = vpop.f32.mrf.mxu0
  %653 = vmatprep.mubr.f32.mxu0 0.0
  %654 = vmatmul.mubr.f32.gmra.mxu0 %v516
  %v655 = vpop.f32.mrf.mxu0
  %v656 = vadd.f32 0.0, %v655
  %v657 = vpop.f32.mrf.mxu0
  %658 = vmatprep.mubr.f32.mxu0 0.0
  %659 = vmatmul.mubr.f32.gmra.mxu0 %v519
  %v660 = vpop.f32.mrf.mxu0
  %v661 = vadd.f32 0.0, %v660
  %v662 = vpop.f32.mrf.mxu0
  %663 = vmatprep.mubr.f32.mxu0 0.0
  %664 = vmatmul.mubr.f32.gmra.mxu0 %v522
  %v665 = vpop.f32.mrf.mxu0
  %v666 = vadd.f32 0.0, %v665
  %v667 = vpop.f32.mrf.mxu0
  %668 = vdwg.mxu0
  %v669 = vmax.f32 %v443, %v591
  %v670 = vmax.f32 %v444, %v596
  %v671 = vmax.f32 %v445, %v601
  %v672 = vmax.f32 %v446, %v606
  %v673 = vmax.f32 %v447, %v611
  %v674 = vmax.f32 %v448, %v616
  %v675 = vmax.f32 %v449, %v621
  %v676 = vmax.f32 %v450, %v626
  %v677 = vmax.f32 %v451, %v631
  %v678 = vmax.f32 %v452, %v636
  %v679 = vmax.f32 %v453, %v641
  %v680 = vmax.f32 %v454, %v646
  %v681 = vmax.f32 %v455, %v651
  %v682 = vmax.f32 %v456, %v656
  %v683 = vmax.f32 %v457, %v661
  %v684 = vmax.f32 %v458, %v666
  %s685 = scalar_lea.vmem %s0, 384
  %v686 = vld [vmem:[%s685] sm:$0xff]
  %v687 = vld [vmem:[%s685 + $0x8] sm:$0xff]
  %v688 = vld [vmem:[%s685 + $0x10] sm:$0xff]
  %v689 = vld [vmem:[%s685 + $0x18] sm:$0xff]
  %v690 = vld [vmem:[%s685 + $0x20] sm:$0xff]
  %v691 = vld [vmem:[%s685 + $0x28] sm:$0xff]
  %v692 = vld [vmem:[%s685 + $0x30] sm:$0xff]
  %v693 = vld [vmem:[%s685 + $0x38] sm:$0xff]
  %v694 = vld [vmem:[%s685 + $0x40] sm:$0xff]
  %v695 = vld [vmem:[%s685 + $0x48] sm:$0xff]
  %v696 = vld [vmem:[%s685 + $0x50] sm:$0xff]
  %v697 = vld [vmem:[%s685 + $0x58] sm:$0xff]
  %v698 = vld [vmem:[%s685 + $0x60] sm:$0xff]
  %v699 = vld [vmem:[%s685 + $0x68] sm:$0xff]
  %v700 = vld [vmem:[%s685 + $0x70] sm:$0xff]
  %v701 = vld [vmem:[%s685 + $0x78] sm:$0xff]
  %v703 = vsel %vm35, %v686, 0
  %v706 = vsel %vm35, %v687, 0
  %v709 = vsel %vm35, %v688, 0
  %v712 = vsel %vm35, %v689, 0
  %v715 = vsel %vm35, %v690, 0
  %v718 = vsel %vm35, %v691, 0
  %v721 = vsel %vm35, %v692, 0
  %v724 = vsel %vm35, %v693, 0
  %v727 = vsel %vm35, %v694, 0
  %v730 = vsel %vm35, %v695, 0
  %v733 = vsel %vm35, %v696, 0
  %v736 = vsel %vm35, %v697, 0
  %v739 = vsel %vm35, %v698, 0
  %v742 = vsel %vm35, %v699, 0
  %v745 = vsel %vm35, %v700, 0
  %v748 = vsel %vm35, %v701, 0
  %750 = vmatprep.subr.mxu0 0.0
  %751 = vmatpush1.msra.mxu0 0.0
  %752 = vmatprep.subr.mxu0 0.0
  %753 = vmatpush1.msra.mxu0 0.0
  %754 = vmatprep.subr.mxu0 0.0
  %755 = vmatpush1.msra.mxu0 0.0
  %756 = vmatprep.subr.mxu0 0.0
  %757 = vmatpush1.msra.mxu0 0.0
  %758 = vmatprep.subr.mxu0 0.0
  %759 = vmatpush1.msra.mxu0 0.0
  %760 = vmatprep.subr.mxu0 0.0
  %761 = vmatpush1.msra.mxu0 0.0
  %762 = vmatprep.subr.mxu0 0.0
  %763 = vmatpush1.msra.mxu0 0.0
  %764 = vmatprep.subr.mxu0 0.0
  %765 = vmatpush1.msra.mxu0 0.0
  %766 = vmatprep.subr.mxu0 0.0
  %767 = vmatpush1.msra.mxu0 0.0
  %768 = vmatprep.subr.mxu0 0.0
  %769 = vmatpush1.msra.mxu0 0.0
  %770 = vmatprep.subr.mxu0 0.0
  %771 = vmatpush1.msra.mxu0 0.0
  %772 = vmatprep.subr.mxu0 0.0
  %773 = vmatpush1.msra.mxu0 %v86
  %774 = vmatprep.subr.mxu0 0.0
  %775 = vmatpush1.msra.mxu0 %v17
  %776 = vmatprep.subr.mxu0 0.0
  %777 = vmatpush1.msra.mxu0 %v16
  %778 = vmatprep.subr.mxu0 0.0
  %779 = vmatpush1.msra.mxu0 %v15
  %780 = vmatprep.subr.mxu0 0.0
  %781 = vmatpush1.msra.mxu0 %v14
  %782 = vmatprep.subr.mxu0 0.0
  %783 = vmatpush2.msra.mxu0 0.0
  %784 = vmatprep.subr.mxu0 0.0
  %785 = vmatpush2.msra.mxu0 0.0
  %786 = vmatprep.subr.mxu0 0.0
  %787 = vmatpush2.msra.mxu0 0.0
  %788 = vmatprep.subr.mxu0 0.0
  %789 = vmatpush2.msra.mxu0 0.0
  %790 = vmatprep.subr.mxu0 0.0
  %791 = vmatpush2.msra.mxu0 0.0
  %792 = vmatprep.subr.mxu0 0.0
  %793 = vmatpush2.msra.mxu0 0.0
  %794 = vmatprep.subr.mxu0 0.0
  %795 = vmatpush2.msra.mxu0 0.0
  %796 = vmatprep.subr.mxu0 0.0
  %797 = vmatpush2.msra.mxu0 0.0
  %798 = vmatprep.subr.mxu0 0.0
  %799 = vmatpush2.msra.mxu0 0.0
  %800 = vmatprep.subr.mxu0 0.0
  %801 = vmatpush2.msra.mxu0 0.0
  %802 = vmatprep.subr.mxu0 0.0
  %803 = vmatpush2.msra.mxu0 0.0
  %804 = vmatprep.subr.mxu0 0.0
  %805 = vmatpush2.msra.mxu0 0.0
  %806 = vmatprep.subr.mxu0 0.0
  %807 = vmatpush2.msra.mxu0 0.0
  %808 = vmatprep.subr.mxu0 0.0
  %809 = vmatpush2.msra.mxu0 0.0
  %810 = vmatprep.subr.mxu0 0.0
  %811 = vmatpush2.msra.mxu0 0.0
  %812 = vmatprep.subr.mxu0 0.0
  %813 = vmatpush2.msra.mxu0 0.0
  %814 = vmatprep.mubr.f32.mxu0 0.0
  %815 = vmatmul.mubr.f32.gmra.mxu0 %v703
  %v816 = vpop.f32.mrf.mxu0
  %v817 = vadd.f32 0.0, %v816
  %v818 = vpop.f32.mrf.mxu0
  %819 = vmatprep.mubr.f32.mxu0 0.0
  %820 = vmatmul.mubr.f32.gmra.mxu0 %v706
  %v821 = vpop.f32.mrf.mxu0
  %v822 = vadd.f32 0.0, %v821
  %v823 = vpop.f32.mrf.mxu0
  %824 = vmatprep.mubr.f32.mxu0 0.0
  %825 = vmatmul.mubr.f32.gmra.mxu0 %v709
  %v826 = vpop.f32.mrf.mxu0
  %v827 = vadd.f32 0.0, %v826
  %v828 = vpop.f32.mrf.mxu0
  %829 = vmatprep.mubr.f32.mxu0 0.0
  %830 = vmatmul.mubr.f32.gmra.mxu0 %v712
  %v831 = vpop.f32.mrf.mxu0
  %v832 = vadd.f32 0.0, %v831
  %v833 = vpop.f32.mrf.mxu0
  %834 = vmatprep.mubr.f32.mxu0 0.0
  %835 = vmatmul.mubr.f32.gmra.mxu0 %v715
  %v836 = vpop.f32.mrf.mxu0
  %v837 = vadd.f32 0.0, %v836
  %v838 = vpop.f32.mrf.mxu0
  %839 = vmatprep.mubr.f32.mxu0 0.0
  %840 = vmatmul.mubr.f32.gmra.mxu0 %v718
  %v841 = vpop.f32.mrf.mxu0
  %v842 = vadd.f32 0.0, %v841
  %v843 = vpop.f32.mrf.mxu0
  %844 = vmatprep.mubr.f32.mxu0 0.0
  %845 = vmatmul.mubr.f32.gmra.mxu0 %v721
  %v846 = vpop.f32.mrf.mxu0
  %v847 = vadd.f32 0.0, %v846
  %v848 = vpop.f32.mrf.mxu0
  %849 = vmatprep.mubr.f32.mxu0 0.0
  %850 = vmatmul.mubr.f32.gmra.mxu0 %v724
  %v851 = vpop.f32.mrf.mxu0
  %v852 = vadd.f32 0.0, %v851
  %v853 = vpop.f32.mrf.mxu0
  %854 = vmatprep.mubr.f32.mxu0 0.0
  %855 = vmatmul.mubr.f32.gmra.mxu0 %v727
  %v856 = vpop.f32.mrf.mxu0
  %v857 = vadd.f32 0.0, %v856
  %v858 = vpop.f32.mrf.mxu0
  %859 = vmatprep.mubr.f32.mxu0 0.0
  %860 = vmatmul.mubr.f32.gmra.mxu0 %v730
  %v861 = vpop.f32.mrf.mxu0
  %v862 = vadd.f32 0.0, %v861
  %v863 = vpop.f32.mrf.mxu0
  %864 = vmatprep.mubr.f32.mxu0 0.0
  %865 = vmatmul.mubr.f32.gmra.mxu0 %v733
  %v866 = vpop.f32.mrf.mxu0
  %v867 = vadd.f32 0.0, %v866
  %v868 = vpop.f32.mrf.mxu0
  %869 = vmatprep.mubr.f32.mxu0 0.0
  %870 = vmatmul.mubr.f32.gmra.mxu0 %v736
  %v871 = vpop.f32.mrf.mxu0
  %v872 = vadd.f32 0.0, %v871
  %v873 = vpop.f32.mrf.mxu0
  %874 = vmatprep.mubr.f32.mxu0 0.0
  %875 = vmatmul.mubr.f32.gmra.mxu0 %v739
  %v876 = vpop.f32.mrf.mxu0
  %v877 = vadd.f32 0.0, %v876
  %v878 = vpop.f32.mrf.mxu0
  %879 = vmatprep.mubr.f32.mxu0 0.0
  %880 = vmatmul.mubr.f32.gmra.mxu0 %v742
  %v881 = vpop.f32.mrf.mxu0
  %v882 = vadd.f32 0.0, %v881
  %v883 = vpop.f32.mrf.mxu0
  %884 = vmatprep.mubr.f32.mxu0 0.0
  %885 = vmatmul.mubr.f32.gmra.mxu0 %v745
  %v886 = vpop.f32.mrf.mxu0
  %v887 = vadd.f32 0.0, %v886
  %v888 = vpop.f32.mrf.mxu0
  %889 = vmatprep.mubr.f32.mxu0 0.0
  %890 = vmatmul.mubr.f32.gmra.mxu0 %v748
  %v891 = vpop.f32.mrf.mxu0
  %v892 = vadd.f32 0.0, %v891
  %v893 = vpop.f32.mrf.mxu0
  %894 = vdwg.mxu0
  %v895 = vmax.f32 %v669, %v817
  %v896 = vmax.f32 %v670, %v822
  %v897 = vmax.f32 %v671, %v827
  %v898 = vmax.f32 %v672, %v832
  %v899 = vmax.f32 %v673, %v837
  %v900 = vmax.f32 %v674, %v842
  %v901 = vmax.f32 %v675, %v847
  %v902 = vmax.f32 %v676, %v852
  %v903 = vmax.f32 %v677, %v857
  %v904 = vmax.f32 %v678, %v862
  %v905 = vmax.f32 %v679, %v867
  %v906 = vmax.f32 %v680, %v872
  %v907 = vmax.f32 %v681, %v877
  %v908 = vmax.f32 %v682, %v882
  %v909 = vmax.f32 %v683, %v887
  %v910 = vmax.f32 %v684, %v892
  %v911 = vld [vmem:[%s2] sm:$0x1]
  %v913 = vlaneseq
  %v914 = vshrl.u32 %v913, 7
  %v915 = vsub.s32 0, %v914
  %v916 = vrot.slane %v911, %v915
  %v918 = vadd.f32 %v895, %v916
  %v919 = vadd.f32 %v896, %v916
  %v920 = vadd.f32 %v897, %v916
  %v921 = vadd.f32 %v898, %v916
  %v922 = vadd.f32 %v899, %v916
  %v923 = vadd.f32 %v900, %v916
  %v924 = vadd.f32 %v901, %v916
  %v925 = vadd.f32 %v902, %v916
  %v926 = vadd.f32 %v903, %v916
  %v927 = vadd.f32 %v904, %v916
  %v928 = vadd.f32 %v905, %v916
  %v929 = vadd.f32 %v906, %v916
  %v930 = vadd.f32 %v907, %v916
  %v931 = vadd.f32 %v908, %v916
  %v932 = vadd.f32 %v909, %v916
  %v933 = vadd.f32 %v910, %v916
  %v934 = vmax.f32 %v918, 0.0
  %v935 = vmax.f32 %v919, 0.0
  %v936 = vmax.f32 %v920, 0.0
  %v937 = vmax.f32 %v921, 0.0
  %v938 = vmax.f32 %v922, 0.0
  %v939 = vmax.f32 %v923, 0.0
  %v940 = vmax.f32 %v924, 0.0
  %v941 = vmax.f32 %v925, 0.0
  %v942 = vmax.f32 %v926, 0.0
  %v943 = vmax.f32 %v927, 0.0
  %v944 = vmax.f32 %v928, 0.0
  %v945 = vmax.f32 %v929, 0.0
  %v946 = vmax.f32 %v930, 0.0
  %v947 = vmax.f32 %v931, 0.0
  %v948 = vmax.f32 %v932, 0.0
  %v949 = vmax.f32 %v933, 0.0
  %950 = vst [vmem:[%s3] sm:$0xff] %v934
  %951 = vst [vmem:[%s3 + $0x8] sm:$0xff] %v935
  %952 = vst [vmem:[%s3 + $0x10] sm:$0xff] %v936
  %953 = vst [vmem:[%s3 + $0x18] sm:$0xff] %v937
  %954 = vst [vmem:[%s3 + $0x20] sm:$0xff] %v938
  %955 = vst [vmem:[%s3 + $0x28] sm:$0xff] %v939
  %956 = vst [vmem:[%s3 + $0x30] sm:$0xff] %v940
  %957 = vst [vmem:[%s3 + $0x38] sm:$0xff] %v941
  %958 = vst [vmem:[%s3 + $0x40] sm:$0xff] %v942
  %959 = vst [vmem:[%s3 + $0x48] sm:$0xff] %v943
  %960 = vst [vmem:[%s3 + $0x50] sm:$0xff] %v944
  %961 = vst [vmem:[%s3 + $0x58] sm:$0xff] %v945
  %962 = vst [vmem:[%s3 + $0x60] sm:$0xff] %v946
  %963 = vst [vmem:[%s3 + $0x68] sm:$0xff] %v947
  %964 = vst [vmem:[%s3 + $0x70] sm:$0xff] %v948
  %965 = vst [vmem:[%s3 + $0x78] sm:$0xff] %v949
  // Predicated region
  $region14: #{_lambda_.4} parent=0 // pred_check
    _
  $region15: #{_lambda_.4} parent=0 // pred_check_branch
    %967 = sbr.rel (0) target = $region17
  $region16: #{_lambda_.4} parent=0 // pred_region
    _
  $region17: #{_lambda_.4} parent=0 // pred_fallthru
    _
  // Predicated region
  $region18: #{_lambda_.4} parent=0 // pred_check
    _
  $region19: #{_lambda_.4} parent=0 // pred_check_branch
    %969 = sbr.rel (0) target = $region21
  $region20: #{_lambda_.4} parent=0 // pred_region
    _
  $region21: #{_lambda_.4} parent=0 // pred_fallthru
    _

// kernel: _lambda_.5
$region0: #{_lambda_.5}
  #allocation0 [shape = 'u32[]', space=smem, size = 0x4, offset = 0x4, fixed_abs, tag = 'smem constant byte address 0x4 - core index']
  #allocation1 [shape = 'u32[144,128]{1,0:T(1,128)}', space=vmem, size = 0x12000, scoped, tag = 'internal scratch']
  %s0 = inlined_call_operand.vmem [shape: f32[4,32,72], index: 0, kind: input, shape index: {}]
  %s1 = inlined_call_operand.vmem [shape: f32[72,128], index: 1, kind: input, shape index: {}]
  %s2 = inlined_call_operand.vmem [shape: f32[1,128], index: 2, kind: input, shape index: {}]
  %s3 = inlined_call_operand.vmem [shape: f32[32,128], index: 3, kind: output, shape index: {}]
  %s4 = sld [smem:[#allocation0]]
  $region22: #{_lambda_.5} parent=0
    _
  %s6 = ssub.s32 1, %s4
  %s7 = scalar_select 0, %s6, %s4
  // Predicated region
  $region2: #{_lambda_.5} parent=0 // pred_check
    _
  $region3: #{_lambda_.5} parent=0 // pred_check_branch
    %9 = sbr.rel (0) target = $region5
  $region4: #{_lambda_.5} parent=0 // pred_region
    _
  $region5: #{_lambda_.5} parent=0 // pred_fallthru
    _
  // Predicated region
  $region6: #{_lambda_.5} parent=0 // pred_check
    _
  $region7: #{_lambda_.5} parent=0 // pred_check_branch
    %11 = sbr.rel (0) target = $region9
  $region8: #{_lambda_.5} parent=0 // pred_region
    _
  $region9: #{_lambda_.5} parent=0 // pred_fallthru
    _
  // Predicated region
  $region10: #{_lambda_.5} parent=0 // pred_check
    _
  $region11: #{_lambda_.5} parent=0 // pred_check_branch
    %13 = sbr.rel (0) target = $region13
  $region12: #{_lambda_.5} parent=0 // pred_region
    _
  $region13: #{_lambda_.5} parent=0 // pred_fallthru
    _
  %v14 = vld [vmem:[%s1] sm:$0xff]
  %v15 = vld [vmem:[%s1 + $0x8] sm:$0xff]
  %v16 = vld [vmem:[%s1 + $0x10] sm:$0xff]
  %v17 = vld [vmem:[%s1 + $0x18] sm:$0xff]
  %v18 = vld [vmem:[%s1 + $0x20] sm:$0xff]
  %v19 = vld [vmem:[%s1 + $0x28] sm:$0xff]
  %v20 = vld [vmem:[%s1 + $0x30] sm:$0xff]
  %v21 = vld [vmem:[%s1 + $0x38] sm:$0xff]
  %v22 = vld [vmem:[%s1 + $0x40] sm:$0xff]
  %v23 = vld [vmem:[%s0] sm:$0xff]
  %v24 = vld [vmem:[%s0 + $0x8] sm:$0xff]
  %v25 = vld [vmem:[%s0 + $0x10] sm:$0xff]
  %v26 = vld [vmem:[%s0 + $0x18] sm:$0xff]
  %vm27 = vcmask 588800
  %v29 = vsel %vm27, %v23, 0
  %v32 = vsel %vm27, %v24, 0
  %v35 = vsel %vm27, %v25, 0
  %v38 = vsel %vm27, %v26, 0
  %40 = vmatprep.subr.mxu0 0.0
  %41 = vmatpush1.msra.mxu0 0.0
  %42 = vmatprep.subr.mxu0 0.0
  %43 = vmatpush1.msra.mxu0 0.0
  %44 = vmatprep.subr.mxu0 0.0
  %45 = vmatpush1.msra.mxu0 0.0
  %46 = vmatprep.subr.mxu0 0.0
  %47 = vmatpush1.msra.mxu0 0.0
  %48 = vmatprep.subr.mxu0 0.0
  %49 = vmatpush1.msra.mxu0 0.0
  %50 = vmatprep.subr.mxu0 0.0
  %51 = vmatpush1.msra.mxu0 0.0
  %52 = vmatprep.subr.mxu0 0.0
  %53 = vmatpush1.msra.mxu0 0.0
  %54 = vmatprep.subr.mxu0 0.0
  %55 = vmatpush1.msra.mxu0 %v22
  %56 = vmatprep.subr.mxu0 0.0
  %57 = vmatpush1.msra.mxu0 %v21
  %58 = vmatprep.subr.mxu0 0.0
  %59 = vmatpush1.msra.mxu0 %v20
  %60 = vmatprep.subr.mxu0 0.0
  %61 = vmatpush1.msra.mxu0 %v19
  %62 = vmatprep.subr.mxu0 0.0
  %63 = vmatpush1.msra.mxu0 %v18
  %64 = vmatprep.subr.mxu0 0.0
  %65 = vmatpush1.msra.mxu0 %v17
  %66 = vmatprep.subr.mxu0 0.0
  %67 = vmatpush1.msra.mxu0 %v16
  %68 = vmatprep.subr.mxu0 0.0
  %69 = vmatpush1.msra.mxu0 %v15
  %70 = vmatprep.subr.mxu0 0.0
  %71 = vmatpush1.msra.mxu0 %v14
  %72 = vmatprep.subr.mxu0 0.0
  %73 = vmatpush2.msra.mxu0 0.0
  %74 = vmatprep.subr.mxu0 0.0
  %75 = vmatpush2.msra.mxu0 0.0
  %76 = vmatprep.subr.mxu0 0.0
  %77 = vmatpush2.msra.mxu0 0.0
  %78 = vmatprep.subr.mxu0 0.0
  %79 = vmatpush2.msra.mxu0 0.0
  %80 = vmatprep.subr.mxu0 0.0
  %81 = vmatpush2.msra.mxu0 0.0
  %82 = vmatprep.subr.mxu0 0.0
  %83 = vmatpush2.msra.mxu0 0.0
  %84 = vmatprep.subr.mxu0 0.0
  %85 = vmatpush2.msra.mxu0 0.0
  %86 = vmatprep.subr.mxu0 0.0
  %87 = vmatpush2.msra.mxu0 0.0
  %88 = vmatprep.subr.mxu0 0.0
  %89 = vmatpush2.msra.mxu0 0.0
  %90 = vmatprep.subr.mxu0 0.0
  %91 = vmatpush2.msra.mxu0 0.0
  %92 = vmatprep.subr.mxu0 0.0
  %93 = vmatpush2.msra.mxu0 0.0
  %94 = vmatprep.subr.mxu0 0.0
  %95 = vmatpush2.msra.mxu0 0.0
  %96 = vmatprep.subr.mxu0 0.0
  %97 = vmatpush2.msra.mxu0 0.0
  %98 = vmatprep.subr.mxu0 0.0
  %99 = vmatpush2.msra.mxu0 0.0
  %100 = vmatprep.subr.mxu0 0.0
  %101 = vmatpush2.msra.mxu0 0.0
  %102 = vmatprep.subr.mxu0 0.0
  %103 = vmatpush2.msra.mxu0 0.0
  %104 = vmatprep.mubr.f32.mxu0 0.0
  %105 = vmatmul.mubr.f32.gmra.mxu0 %v29
  %v106 = vpop.f32.mrf.mxu0
  %v107 = vadd.f32 0.0, %v106
  %v108 = vpop.f32.mrf.mxu0
  %109 = vmatprep.mubr.f32.mxu0 0.0
  %110 = vmatmul.mubr.f32.gmra.mxu0 %v32
  %v111 = vpop.f32.mrf.mxu0
  %v112 = vadd.f32 0.0, %v111
  %v113 = vpop.f32.mrf.mxu0
  %114 = vmatprep.mubr.f32.mxu0 0.0
  %115 = vmatmul.mubr.f32.gmra.mxu0 %v35
  %v116 = vpop.f32.mrf.mxu0
  %v117 = vadd.f32 0.0, %v116
  %v118 = vpop.f32.mrf.mxu0
  %119 = vmatprep.mubr.f32.mxu0 0.0
  %120 = vmatmul.mubr.f32.gmra.mxu0 %v38
  %v121 = vpop.f32.mrf.mxu0
  %v122 = vadd.f32 0.0, %v121
  %v123 = vpop.f32.mrf.mxu0
  %124 = vdwg.mxu0
  %s125 = scalar_lea.vmem %s0, 32
  %v126 = vld [vmem:[%s125] sm:$0xff]
  %v127 = vld [vmem:[%s125 + $0x8] sm:$0xff]
  %v128 = vld [vmem:[%s125 + $0x10] sm:$0xff]
  %v129 = vld [vmem:[%s125 + $0x18] sm:$0xff]
  %v131 = vsel %vm27, %v126, 0
  %v134 = vsel %vm27, %v127, 0
  %v137 = vsel %vm27, %v128, 0
  %v140 = vsel %vm27, %v129, 0
  %142 = vmatprep.subr.mxu0 0.0
  %143 = vmatpush1.msra.mxu0 0.0
  %144 = vmatprep.subr.mxu0 0.0
  %145 = vmatpush1.msra.mxu0 0.0
  %146 = vmatprep.subr.mxu0 0.0
  %147 = vmatpush1.msra.mxu0 0.0
  %148 = vmatprep.subr.mxu0 0.0
  %149 = vmatpush1.msra.mxu0 0.0
  %150 = vmatprep.subr.mxu0 0.0
  %151 = vmatpush1.msra.mxu0 0.0
  %152 = vmatprep.subr.mxu0 0.0
  %153 = vmatpush1.msra.mxu0 0.0
  %154 = vmatprep.subr.mxu0 0.0
  %155 = vmatpush1.msra.mxu0 0.0
  %156 = vmatprep.subr.mxu0 0.0
  %157 = vmatpush1.msra.mxu0 %v22
  %158 = vmatprep.subr.mxu0 0.0
  %159 = vmatpush1.msra.mxu0 %v21
  %160 = vmatprep.subr.mxu0 0.0
  %161 = vmatpush1.msra.mxu0 %v20
  %162 = vmatprep.subr.mxu0 0.0
  %163 = vmatpush1.msra.mxu0 %v19
  %164 = vmatprep.subr.mxu0 0.0
  %165 = vmatpush1.msra.mxu0 %v18
  %166 = vmatprep.subr.mxu0 0.0
  %167 = vmatpush1.msra.mxu0 %v17
  %168 = vmatprep.subr.mxu0 0.0
  %169 = vmatpush1.msra.mxu0 %v16
  %170 = vmatprep.subr.mxu0 0.0
  %171 = vmatpush1.msra.mxu0 %v15
  %172 = vmatprep.subr.mxu0 0.0
  %173 = vmatpush1.msra.mxu0 %v14
  %174 = vmatprep.subr.mxu0 0.0
  %175 = vmatpush2.msra.mxu0 0.0
  %176 = vmatprep.subr.mxu0 0.0
  %177 = vmatpush2.msra.mxu0 0.0
  %178 = vmatprep.subr.mxu0 0.0
  %179 = vmatpush2.msra.mxu0 0.0
  %180 = vmatprep.subr.mxu0 0.0
  %181 = vmatpush2.msra.mxu0 0.0
  %182 = vmatprep.subr.mxu0 0.0
  %183 = vmatpush2.msra.mxu0 0.0
  %184 = vmatprep.subr.mxu0 0.0
  %185 = vmatpush2.msra.mxu0 0.0
  %186 = vmatprep.subr.mxu0 0.0
  %187 = vmatpush2.msra.mxu0 0.0
  %188 = vmatprep.subr.mxu0 0.0
  %189 = vmatpush2.msra.mxu0 0.0
  %190 = vmatprep.subr.mxu0 0.0
  %191 = vmatpush2.msra.mxu0 0.0
  %192 = vmatprep.subr.mxu0 0.0
  %193 = vmatpush2.msra.mxu0 0.0
  %194 = vmatprep.subr.mxu0 0.0
  %195 = vmatpush2.msra.mxu0 0.0
  %196 = vmatprep.subr.mxu0 0.0
  %197 = vmatpush2.msra.mxu0 0.0
  %198 = vmatprep.subr.mxu0 0.0
  %199 = vmatpush2.msra.mxu0 0.0
  %200 = vmatprep.subr.mxu0 0.0
  %201 = vmatpush2.msra.mxu0 0.0
  %202 = vmatprep.subr.mxu0 0.0
  %203 = vmatpush2.msra.mxu0 0.0
  %204 = vmatprep.subr.mxu0 0.0
  %205 = vmatpush2.msra.mxu0 0.0
  %206 = vmatprep.mubr.f32.mxu0 0.0
  %207 = vmatmul.mubr.f32.gmra.mxu0 %v131
  %v208 = vpop.f32.mrf.mxu0
  %v209 = vadd.f32 0.0, %v208
  %v210 = vpop.f32.mrf.mxu0
  %211 = vmatprep.mubr.f32.mxu0 0.0
  %212 = vmatmul.mubr.f32.gmra.mxu0 %v134
  %v213 = vpop.f32.mrf.mxu0
  %v214 = vadd.f32 0.0, %v213
  %v215 = vpop.f32.mrf.mxu0
  %216 = vmatprep.mubr.f32.mxu0 0.0
  %217 = vmatmul.mubr.f32.gmra.mxu0 %v137
  %v218 = vpop.f32.mrf.mxu0
  %v219 = vadd.f32 0.0, %v218
  %v220 = vpop.f32.mrf.mxu0
  %221 = vmatprep.mubr.f32.mxu0 0.0
  %222 = vmatmul.mubr.f32.gmra.mxu0 %v140
  %v223 = vpop.f32.mrf.mxu0
  %v224 = vadd.f32 0.0, %v223
  %v225 = vpop.f32.mrf.mxu0
  %226 = vdwg.mxu0
  %v227 = vmax.f32 %v107, %v209
  %v228 = vmax.f32 %v112, %v214
  %v229 = vmax.f32 %v117, %v219
  %v230 = vmax.f32 %v122, %v224
  %s231 = scalar_lea.vmem %s0, 64
  %v232 = vld [vmem:[%s231] sm:$0xff]
  %v233 = vld [vmem:[%s231 + $0x8] sm:$0xff]
  %v234 = vld [vmem:[%s231 + $0x10] sm:$0xff]
  %v235 = vld [vmem:[%s231 + $0x18] sm:$0xff]
  %v237 = vsel %vm27, %v232, 0
  %v240 = vsel %vm27, %v233, 0
  %v243 = vsel %vm27, %v234, 0
  %v246 = vsel %vm27, %v235, 0
  %248 = vmatprep.subr.mxu0 0.0
  %249 = vmatpush1.msra.mxu0 0.0
  %250 = vmatprep.subr.mxu0 0.0
  %251 = vmatpush1.msra.mxu0 0.0
  %252 = vmatprep.subr.mxu0 0.0
  %253 = vmatpush1.msra.mxu0 0.0
  %254 = vmatprep.subr.mxu0 0.0
  %255 = vmatpush1.msra.mxu0 0.0
  %256 = vmatprep.subr.mxu0 0.0
  %257 = vmatpush1.msra.mxu0 0.0
  %258 = vmatprep.subr.mxu0 0.0
  %259 = vmatpush1.msra.mxu0 0.0
  %260 = vmatprep.subr.mxu0 0.0
  %261 = vmatpush1.msra.mxu0 0.0
  %262 = vmatprep.subr.mxu0 0.0
  %263 = vmatpush1.msra.mxu0 %v22
  %264 = vmatprep.subr.mxu0 0.0
  %265 = vmatpush1.msra.mxu0 %v21
  %266 = vmatprep.subr.mxu0 0.0
  %267 = vmatpush1.msra.mxu0 %v20
  %268 = vmatprep.subr.mxu0 0.0
  %269 = vmatpush1.msra.mxu0 %v19
  %270 = vmatprep.subr.mxu0 0.0
  %271 = vmatpush1.msra.mxu0 %v18
  %272 = vmatprep.subr.mxu0 0.0
  %273 = vmatpush1.msra.mxu0 %v17
  %274 = vmatprep.subr.mxu0 0.0
  %275 = vmatpush1.msra.mxu0 %v16
  %276 = vmatprep.subr.mxu0 0.0
  %277 = vmatpush1.msra.mxu0 %v15
  %278 = vmatprep.subr.mxu0 0.0
  %279 = vmatpush1.msra.mxu0 %v14
  %280 = vmatprep.subr.mxu0 0.0
  %281 = vmatpush2.msra.mxu0 0.0
  %282 = vmatprep.subr.mxu0 0.0
  %283 = vmatpush2.msra.mxu0 0.0
  %284 = vmatprep.subr.mxu0 0.0
  %285 = vmatpush2.msra.mxu0 0.0
  %286 = vmatprep.subr.mxu0 0.0
  %287 = vmatpush2.msra.mxu0 0.0
  %288 = vmatprep.subr.mxu0 0.0
  %289 = vmatpush2.msra.mxu0 0.0
  %290 = vmatprep.subr.mxu0 0.0
  %291 = vmatpush2.msra.mxu0 0.0
  %292 = vmatprep.subr.mxu0 0.0
  %293 = vmatpush2.msra.mxu0 0.0
  %294 = vmatprep.subr.mxu0 0.0
  %295 = vmatpush2.msra.mxu0 0.0
  %296 = vmatprep.subr.mxu0 0.0
  %297 = vmatpush2.msra.mxu0 0.0
  %298 = vmatprep.subr.mxu0 0.0
  %299 = vmatpush2.msra.mxu0 0.0
  %300 = vmatprep.subr.mxu0 0.0
  %301 = vmatpush2.msra.mxu0 0.0
  %302 = vmatprep.subr.mxu0 0.0
  %303 = vmatpush2.msra.mxu0 0.0
  %304 = vmatprep.subr.mxu0 0.0
  %305 = vmatpush2.msra.mxu0 0.0
  %306 = vmatprep.subr.mxu0 0.0
  %307 = vmatpush2.msra.mxu0 0.0
  %308 = vmatprep.subr.mxu0 0.0
  %309 = vmatpush2.msra.mxu0 0.0
  %310 = vmatprep.subr.mxu0 0.0
  %311 = vmatpush2.msra.mxu0 0.0
  %312 = vmatprep.mubr.f32.mxu0 0.0
  %313 = vmatmul.mubr.f32.gmra.mxu0 %v237
  %v314 = vpop.f32.mrf.mxu0
  %v315 = vadd.f32 0.0, %v314
  %v316 = vpop.f32.mrf.mxu0
  %317 = vmatprep.mubr.f32.mxu0 0.0
  %318 = vmatmul.mubr.f32.gmra.mxu0 %v240
  %v319 = vpop.f32.mrf.mxu0
  %v320 = vadd.f32 0.0, %v319
  %v321 = vpop.f32.mrf.mxu0
  %322 = vmatprep.mubr.f32.mxu0 0.0
  %323 = vmatmul.mubr.f32.gmra.mxu0 %v243
  %v324 = vpop.f32.mrf.mxu0
  %v325 = vadd.f32 0.0, %v324
  %v326 = vpop.f32.mrf.mxu0
  %327 = vmatprep.mubr.f32.mxu0 0.0
  %328 = vmatmul.mubr.f32.gmra.mxu0 %v246
  %v329 = vpop.f32.mrf.mxu0
  %v330 = vadd.f32 0.0, %v329
  %v331 = vpop.f32.mrf.mxu0
  %332 = vdwg.mxu0
  %v333 = vmax.f32 %v227, %v315
  %v334 = vmax.f32 %v228, %v320
  %v335 = vmax.f32 %v229, %v325
  %v336 = vmax.f32 %v230, %v330
  %s337 = scalar_lea.vmem %s0, 96
  %v338 = vld [vmem:[%s337] sm:$0xff]
  %v339 = vld [vmem:[%s337 + $0x8] sm:$0xff]
  %v340 = vld [vmem:[%s337 + $0x10] sm:$0xff]
  %v341 = vld [vmem:[%s337 + $0x18] sm:$0xff]
  %v343 = vsel %vm27, %v338, 0
  %v346 = vsel %vm27, %v339, 0
  %v349 = vsel %vm27, %v340, 0
  %v352 = vsel %vm27, %v341, 0
  %354 = vmatprep.subr.mxu0 0.0
  %355 = vmatpush1.msra.mxu0 0.0
  %356 = vmatprep.subr.mxu0 0.0
  %357 = vmatpush1.msra.mxu0 0.0
  %358 = vmatprep.subr.mxu0 0.0
  %359 = vmatpush1.msra.mxu0 0.0
  %360 = vmatprep.subr.mxu0 0.0
  %361 = vmatpush1.msra.mxu0 0.0
  %362 = vmatprep.subr.mxu0 0.0
  %363 = vmatpush1.msra.mxu0 0.0
  %364 = vmatprep.subr.mxu0 0.0
  %365 = vmatpush1.msra.mxu0 0.0
  %366 = vmatprep.subr.mxu0 0.0
  %367 = vmatpush1.msra.mxu0 0.0
  %368 = vmatprep.subr.mxu0 0.0
  %369 = vmatpush1.msra.mxu0 %v22
  %370 = vmatprep.subr.mxu0 0.0
  %371 = vmatpush1.msra.mxu0 %v21
  %372 = vmatprep.subr.mxu0 0.0
  %373 = vmatpush1.msra.mxu0 %v20
  %374 = vmatprep.subr.mxu0 0.0
  %375 = vmatpush1.msra.mxu0 %v19
  %376 = vmatprep.subr.mxu0 0.0
  %377 = vmatpush1.msra.mxu0 %v18
  %378 = vmatprep.subr.mxu0 0.0
  %379 = vmatpush1.msra.mxu0 %v17
  %380 = vmatprep.subr.mxu0 0.0
  %381 = vmatpush1.msra.mxu0 %v16
  %382 = vmatprep.subr.mxu0 0.0
  %383 = vmatpush1.msra.mxu0 %v15
  %384 = vmatprep.subr.mxu0 0.0
  %385 = vmatpush1.msra.mxu0 %v14
  %386 = vmatprep.subr.mxu0 0.0
  %387 = vmatpush2.msra.mxu0 0.0
  %388 = vmatprep.subr.mxu0 0.0
  %389 = vmatpush2.msra.mxu0 0.0
  %390 = vmatprep.subr.mxu0 0.0
  %391 = vmatpush2.msra.mxu0 0.0
  %392 = vmatprep.subr.mxu0 0.0
  %393 = vmatpush2.msra.mxu0 0.0
  %394 = vmatprep.subr.mxu0 0.0
  %395 = vmatpush2.msra.mxu0 0.0
  %396 = vmatprep.subr.mxu0 0.0
  %397 = vmatpush2.msra.mxu0 0.0
  %398 = vmatprep.subr.mxu0 0.0
  %399 = vmatpush2.msra.mxu0 0.0
  %400 = vmatprep.subr.mxu0 0.0
  %401 = vmatpush2.msra.mxu0 0.0
  %402 = vmatprep.subr.mxu0 0.0
  %403 = vmatpush2.msra.mxu0 0.0
  %404 = vmatprep.subr.mxu0 0.0
  %405 = vmatpush2.msra.mxu0 0.0
  %406 = vmatprep.subr.mxu0 0.0
  %407 = vmatpush2.msra.mxu0 0.0
  %408 = vmatprep.subr.mxu0 0.0
  %409 = vmatpush2.msra.mxu0 0.0
  %410 = vmatprep.subr.mxu0 0.0
  %411 = vmatpush2.msra.mxu0 0.0
  %412 = vmatprep.subr.mxu0 0.0
  %413 = vmatpush2.msra.mxu0 0.0
  %414 = vmatprep.subr.mxu0 0.0
  %415 = vmatpush2.msra.mxu0 0.0
  %416 = vmatprep.subr.mxu0 0.0
  %417 = vmatpush2.msra.mxu0 0.0
  %418 = vmatprep.mubr.f32.mxu0 0.0
  %419 = vmatmul.mubr.f32.gmra.mxu0 %v343
  %v420 = vpop.f32.mrf.mxu0
  %v421 = vadd.f32 0.0, %v420
  %v422 = vpop.f32.mrf.mxu0
  %423 = vmatprep.mubr.f32.mxu0 0.0
  %424 = vmatmul.mubr.f32.gmra.mxu0 %v346
  %v425 = vpop.f32.mrf.mxu0
  %v426 = vadd.f32 0.0, %v425
  %v427 = vpop.f32.mrf.mxu0
  %428 = vmatprep.mubr.f32.mxu0 0.0
  %429 = vmatmul.mubr.f32.gmra.mxu0 %v349
  %v430 = vpop.f32.mrf.mxu0
  %v431 = vadd.f32 0.0, %v430
  %v432 = vpop.f32.mrf.mxu0
  %433 = vmatprep.mubr.f32.mxu0 0.0
  %434 = vmatmul.mubr.f32.gmra.mxu0 %v352
  %v435 = vpop.f32.mrf.mxu0
  %v436 = vadd.f32 0.0, %v435
  %v437 = vpop.f32.mrf.mxu0
  %438 = vdwg.mxu0
  %v439 = vmax.f32 %v333, %v421
  %v440 = vmax.f32 %v334, %v426
  %v441 = vmax.f32 %v335, %v431
  %v442 = vmax.f32 %v336, %v436
  %v443 = vld [vmem:[%s2] sm:$0x1]
  %v445 = vlaneseq
  %v446 = vshrl.u32 %v445, 7
  %v447 = vsub.s32 0, %v446
  %v448 = vrot.slane %v443, %v447
  %v450 = vadd.f32 %v439, %v448
  %v451 = vadd.f32 %v440, %v448
  %v452 = vadd.f32 %v441, %v448
  %v453 = vadd.f32 %v442, %v448
  %v454 = vmax.f32 %v450, 0.0
  %v455 = vmax.f32 %v451, 0.0
  %v456 = vmax.f32 %v452, 0.0
  %v457 = vmax.f32 %v453, 0.0
  %458 = vst [vmem:[%s3] sm:$0xff] %v454
  %459 = vst [vmem:[%s3 + $0x8] sm:$0xff] %v455
  %460 = vst [vmem:[%s3 + $0x10] sm:$0xff] %v456
  %461 = vst [vmem:[%s3 + $0x18] sm:$0xff] %v457
  // Predicated region
  $region14: #{_lambda_.5} parent=0 // pred_check
    _
  $region15: #{_lambda_.5} parent=0 // pred_check_branch
    %463 = sbr.rel (0) target = $region17
  $region16: #{_lambda_.5} parent=0 // pred_region
    _
  $region17: #{_lambda_.5} parent=0 // pred_fallthru
    _
  // Predicated region
  $region18: #{_lambda_.5} parent=0 // pred_check
    _
  $region19: #{_lambda_.5} parent=0 // pred_check_branch
    %465 = sbr.rel (0) target = $region21
  $region20: #{_lambda_.5} parent=0 // pred_region
    _
  $region21: #{_lambda_.5} parent=0 // pred_fallthru
    _

// kernel: _lambda_.6
$region0: #{_lambda_.6}
  #allocation0 [shape = 'u32[]', space=smem, size = 0x4, offset = 0x4, fixed_abs, tag = 'smem constant byte address 0x4 - core index']
  #allocation1 [shape = 'u32[144,128]{1,0:T(1,128)}', space=vmem, size = 0x12000, scoped, tag = 'internal scratch']
  #allocation2 [shape = 'f32[8,128]{1,0:T(8,128)}', space=vmem, size = 0x1000, scoped, tag = 'scratch operand']
  %s0 = inlined_call_operand.vmem [shape: f32[8,256], index: 0, kind: input, shape index: {}]
  %s1 = inlined_call_operand.vmem [shape: f32[256,128], index: 1, kind: input, shape index: {}]
  %s2 = inlined_call_operand.vmem [shape: f32[1,128], index: 2, kind: input, shape index: {}]
  %s3 = inlined_call_operand.vmem [shape: f32[8,128], index: 3, kind: output, shape index: {}]
  %s4 = sld [smem:[#allocation0]]
  $region30: #{_lambda_.6} parent=0
    _
  %s6 = ssub.s32 1, %s4
  %s7 = scalar_select 0, %s6, %s4
  // Predicated region
  $region2: #{_lambda_.6} parent=0 // pred_check
    _
  $region3: #{_lambda_.6} parent=0 // pred_check_branch
    %9 = sbr.rel (0) target = $region5
  $region4: #{_lambda_.6} parent=0 // pred_region
    _
  $region5: #{_lambda_.6} parent=0 // pred_fallthru
    _
  // Predicated region
  $region6: #{_lambda_.6} parent=0 // pred_check
    _
  $region7: #{_lambda_.6} parent=0 // pred_check_branch
    %11 = sbr.rel (0) target = $region9
  $region8: #{_lambda_.6} parent=0 // pred_region
    _
  $region9: #{_lambda_.6} parent=0 // pred_fallthru
    _
  // Predicated region
  $region10: #{_lambda_.6} parent=0 // pred_check
    _
  $region11: #{_lambda_.6} parent=0 // pred_check_branch
    %13 = sbr.rel (0) target = $region13
  $region12: #{_lambda_.6} parent=0 // pred_region
    _
  $region13: #{_lambda_.6} parent=0 // pred_fallthru
    _
  %p14 = scmp.eq.s32.totalorder 0, 0
  // Predicated region
  $region14: #{_lambda_.6} parent=0 // pred_check
    %p15 = pneg %p14
  $region15: #{_lambda_.6} parent=0 // pred_check_branch
    %17 = sbr.rel (%p15) target = $region17
  $region16: #{_lambda_.6} parent=0 // pred_region
    %18 = vst [vmem:[#allocation2] sm:$0xff] 0.0
  $region17: #{_lambda_.6} parent=0 // pred_fallthru
    _
  %v19 = vld [vmem:[#allocation2] sm:$0xff]
  %v20 = vld [vmem:[%s0] sm:$0xff]
  %v21 = vld [vmem:[%s0 + $0x8] sm:$0xff]
  %v22 = vld [vmem:[%s1] sm:$0xff]
  %v23 = vld [vmem:[%s1 + $0x8] sm:$0xff]
  %v24 = vld [vmem:[%s1 + $0x10] sm:$0xff]
  %v25 = vld [vmem:[%s1 + $0x18] sm:$0xff]
  %v26 = vld [vmem:[%s1 + $0x20] sm:$0xff]
  %v27 = vld [vmem:[%s1 + $0x28] sm:$0xff]
  %v28 = vld [vmem:[%s1 + $0x30] sm:$0xff]
  %v29 = vld [vmem:[%s1 + $0x38] sm:$0xff]
  %v30 = vld [vmem:[%s1 + $0x40] sm:$0xff]
  %v31 = vld [vmem:[%s1 + $0x48] sm:$0xff]
  %v32 = vld [vmem:[%s1 + $0x50] sm:$0xff]
  %v33 = vld [vmem:[%s1 + $0x58] sm:$0xff]
  %v34 = vld [vmem:[%s1 + $0x60] sm:$0xff]
  %v35 = vld [vmem:[%s1 + $0x68] sm:$0xff]
  %v36 = vld [vmem:[%s1 + $0x70] sm:$0xff]
  %v37 = vld [vmem:[%s1 + $0x78] sm:$0xff]
  %v38 = vld [vmem:[%s1 + $0x80] sm:$0xff]
  %v39 = vld [vmem:[%s1 + $0x88] sm:$0xff]
  %v40 = vld [vmem:[%s1 + $0x90] sm:$0xff]
  %v41 = vld [vmem:[%s1 + $0x98] sm:$0xff]
  %v42 = vld [vmem:[%s1 + $0xa0] sm:$0xff]
  %v43 = vld [vmem:[%s1 + $0xa8] sm:$0xff]
  %v44 = vld [vmem:[%s1 + $0xb0] sm:$0xff]
  %v45 = vld [vmem:[%s1 + $0xb8] sm:$0xff]
  %v46 = vld [vmem:[%s1 + $0xc0] sm:$0xff]
  %v47 = vld [vmem:[%s1 + $0xc8] sm:$0xff]
  %v48 = vld [vmem:[%s1 + $0xd0] sm:$0xff]
  %v49 = vld [vmem:[%s1 + $0xd8] sm:$0xff]
  %v50 = vld [vmem:[%s1 + $0xe0] sm:$0xff]
  %v51 = vld [vmem:[%s1 + $0xe8] sm:$0xff]
  %v52 = vld [vmem:[%s1 + $0xf0] sm:$0xff]
  %v53 = vld [vmem:[%s1 + $0xf8] sm:$0xff]
  %54 = vmatprep.subr.mxu0 0.0
  %55 = vmatpush1.msra.mxu0 %v37
  %56 = vmatprep.subr.mxu0 0.0
  %57 = vmatpush1.msra.mxu0 %v36
  %58 = vmatprep.subr.mxu0 0.0
  %59 = vmatpush1.msra.mxu0 %v35
  %60 = vmatprep.subr.mxu0 0.0
  %61 = vmatpush1.msra.mxu0 %v34
  %62 = vmatprep.subr.mxu0 0.0
  %63 = vmatpush1.msra.mxu0 %v33
  %64 = vmatprep.subr.mxu0 0.0
  %65 = vmatpush1.msra.mxu0 %v32
  %66 = vmatprep.subr.mxu0 0.0
  %67 = vmatpush1.msra.mxu0 %v31
  %68 = vmatprep.subr.mxu0 0.0
  %69 = vmatpush1.msra.mxu0 %v30
  %70 = vmatprep.subr.mxu0 0.0
  %71 = vmatpush1.msra.mxu0 %v29
  %72 = vmatprep.subr.mxu0 0.0
  %73 = vmatpush1.msra.mxu0 %v28
  %74 = vmatprep.subr.mxu0 0.0
  %75 = vmatpush1.msra.mxu0 %v27
  %76 = vmatprep.subr.mxu0 0.0
  %77 = vmatpush1.msra.mxu0 %v26
  %78 = vmatprep.subr.mxu0 0.0
  %79 = vmatpush1.msra.mxu0 %v25
  %80 = vmatprep.subr.mxu0 0.0
  %81 = vmatpush1.msra.mxu0 %v24
  %82 = vmatprep.subr.mxu0 0.0
  %83 = vmatpush1.msra.mxu0 %v23
  %84 = vmatprep.subr.mxu0 0.0
  %85 = vmatpush1.msra.mxu0 %v22
  %86 = vmatprep.subr.mxu0 0.0
  %87 = vmatpush2.msra.mxu0 %v53
  %88 = vmatprep.subr.mxu0 0.0
  %89 = vmatpush2.msra.mxu0 %v52
  %90 = vmatprep.subr.mxu0 0.0
  %91 = vmatpush2.msra.mxu0 %v51
  %92 = vmatprep.subr.mxu0 0.0
  %93 = vmatpush2.msra.mxu0 %v50
  %94 = vmatprep.subr.mxu0 0.0
  %95 = vmatpush2.msra.mxu0 %v49
  %96 = vmatprep.subr.mxu0 0.0
  %97 = vmatpush2.msra.mxu0 %v48
  %98 = vmatprep.subr.mxu0 0.0
  %99 = vmatpush2.msra.mxu0 %v47
  %100 = vmatprep.subr.mxu0 0.0
  %101 = vmatpush2.msra.mxu0 %v46
  %102 = vmatprep.subr.mxu0 0.0
  %103 = vmatpush2.msra.mxu0 %v45
  %104 = vmatprep.subr.mxu0 0.0
  %105 = vmatpush2.msra.mxu0 %v44
  %106 = vmatprep.subr.mxu0 0.0
  %107 = vmatpush2.msra.mxu0 %v43
  %108 = vmatprep.subr.mxu0 0.0
  %109 = vmatpush2.msra.mxu0 %v42
  %110 = vmatprep.subr.mxu0 0.0
  %111 = vmatpush2.msra.mxu0 %v41
  %112 = vmatprep.subr.mxu0 0.0
  %113 = vmatpush2.msra.mxu0 %v40
  %114 = vmatprep.subr.mxu0 0.0
  %115 = vmatpush2.msra.mxu0 %v39
  %116 = vmatprep.subr.mxu0 0.0
  %117 = vmatpush2.msra.mxu0 %v38
  %118 = vmatprep.mubr.f32.mxu0 %v21
  %119 = vmatmul.mubr.f32.gmra.mxu0 %v20
  %v120 = vpop.f32.mrf.mxu0
  %v121 = vadd.f32 0.0, %v120
  %v122 = vpop.f32.mrf.mxu0
  %123 = vdwg.mxu0
  %v124 = vadd.f32 %v19, %v121
  %125 = vst [vmem:[#allocation2] sm:$0xff] %v124
  // Predicated region
  $region18: #{_lambda_.6} parent=0 // pred_check
    %p126 = pneg %p14
  $region19: #{_lambda_.6} parent=0 // pred_check_branch
    %128 = sbr.rel (%p126) target = $region21
  $region20: #{_lambda_.6} parent=0 // pred_region
    %v129 = vld [vmem:[#allocation2] sm:$0xff]
    %v130 = vld [vmem:[%s2] sm:$0x1]
    %v132 = vlaneseq
    %v133 = vshrl.u32 %v132, 7
    %v134 = vsub.s32 0, %v133
    %v135 = vrot.slane %v130, %v134
    %v137 = vadd.f32 %v129, %v135
    %v138 = vmax.f32 %v137, 0.0
    %139 = vst [vmem:[%s3] sm:$0xff] %v138
  $region21: #{_lambda_.6} parent=0 // pred_fallthru
    _
  // Predicated region
  $region22: #{_lambda_.6} parent=0 // pred_check
    _
  $region23: #{_lambda_.6} parent=0 // pred_check_branch
    %141 = sbr.rel (0) target = $region25
  $region24: #{_lambda_.6} parent=0 // pred_region
    _
  $region25: #{_lambda_.6} parent=0 // pred_fallthru
    _
  // Predicated region
  $region26: #{_lambda_.6} parent=0 // pred_check
    _
  $region27: #{_lambda_.6} parent=0 // pred_check_branch
    %143 = sbr.rel (0) target = $region29
  $region28: #{_lambda_.6} parent=0 // pred_region
    _
  $region29: #{_lambda_.6} parent=0 // pred_fallthru
    _

// kernel: _lambda_.7
$region0: #{_lambda_.7}
  #allocation0 [shape = 'u32[]', space=smem, size = 0x4, offset = 0x4, fixed_abs, tag = 'smem constant byte address 0x4 - core index']
  #allocation1 [shape = 'u32[144,128]{1,0:T(1,128)}', space=vmem, size = 0x12000, scoped, tag = 'internal scratch']
  #allocation2 [shape = 'f32[8,128]{1,0:T(8,128)}', space=vmem, size = 0x1000, scoped, tag = 'scratch operand']
  %s0 = inlined_call_operand.vmem [shape: f32[8,128], index: 0, kind: input, shape index: {}]
  %s1 = inlined_call_operand.vmem [shape: f32[128,128], index: 1, kind: input, shape index: {}]
  %s2 = inlined_call_operand.vmem [shape: f32[1,128], index: 2, kind: input, shape index: {}]
  %s3 = inlined_call_operand.vmem [shape: f32[8,128], index: 3, kind: output, shape index: {}]
  %s4 = sld [smem:[#allocation0]]
  $region30: #{_lambda_.7} parent=0
    _
  %s6 = ssub.s32 1, %s4
  %s7 = scalar_select 0, %s6, %s4
  // Predicated region
  $region2: #{_lambda_.7} parent=0 // pred_check
    _
  $region3: #{_lambda_.7} parent=0 // pred_check_branch
    %9 = sbr.rel (0) target = $region5
  $region4: #{_lambda_.7} parent=0 // pred_region
    _
  $region5: #{_lambda_.7} parent=0 // pred_fallthru
    _
  // Predicated region
  $region6: #{_lambda_.7} parent=0 // pred_check
    _
  $region7: #{_lambda_.7} parent=0 // pred_check_branch
    %11 = sbr.rel (0) target = $region9
  $region8: #{_lambda_.7} parent=0 // pred_region
    _
  $region9: #{_lambda_.7} parent=0 // pred_fallthru
    _
  // Predicated region
  $region10: #{_lambda_.7} parent=0 // pred_check
    _
  $region11: #{_lambda_.7} parent=0 // pred_check_branch
    %13 = sbr.rel (0) target = $region13
  $region12: #{_lambda_.7} parent=0 // pred_region
    _
  $region13: #{_lambda_.7} parent=0 // pred_fallthru
    _
  %p14 = scmp.eq.s32.totalorder 0, 0
  // Predicated region
  $region14: #{_lambda_.7} parent=0 // pred_check
    %p15 = pneg %p14
  $region15: #{_lambda_.7} parent=0 // pred_check_branch
    %17 = sbr.rel (%p15) target = $region17
  $region16: #{_lambda_.7} parent=0 // pred_region
    %18 = vst [vmem:[#allocation2] sm:$0xff] 0.0
  $region17: #{_lambda_.7} parent=0 // pred_fallthru
    _
  %v19 = vld [vmem:[#allocation2] sm:$0xff]
  %v20 = vld [vmem:[%s0] sm:$0xff]
  %v21 = vld [vmem:[%s1] sm:$0xff]
  %v22 = vld [vmem:[%s1 + $0x8] sm:$0xff]
  %v23 = vld [vmem:[%s1 + $0x10] sm:$0xff]
  %v24 = vld [vmem:[%s1 + $0x18] sm:$0xff]
  %v25 = vld [vmem:[%s1 + $0x20] sm:$0xff]
  %v26 = vld [vmem:[%s1 + $0x28] sm:$0xff]
  %v27 = vld [vmem:[%s1 + $0x30] sm:$0xff]
  %v28 = vld [vmem:[%s1 + $0x38] sm:$0xff]
  %v29 = vld [vmem:[%s1 + $0x40] sm:$0xff]
  %v30 = vld [vmem:[%s1 + $0x48] sm:$0xff]
  %v31 = vld [vmem:[%s1 + $0x50] sm:$0xff]
  %v32 = vld [vmem:[%s1 + $0x58] sm:$0xff]
  %v33 = vld [vmem:[%s1 + $0x60] sm:$0xff]
  %v34 = vld [vmem:[%s1 + $0x68] sm:$0xff]
  %v35 = vld [vmem:[%s1 + $0x70] sm:$0xff]
  %v36 = vld [vmem:[%s1 + $0x78] sm:$0xff]
  %37 = vmatprep.subr.mxu0 0.0
  %38 = vmatpush1.msra.mxu0 %v36
  %39 = vmatprep.subr.mxu0 0.0
  %40 = vmatpush1.msra.mxu0 %v35
  %41 = vmatprep.subr.mxu0 0.0
  %42 = vmatpush1.msra.mxu0 %v34
  %43 = vmatprep.subr.mxu0 0.0
  %44 = vmatpush1.msra.mxu0 %v33
  %45 = vmatprep.subr.mxu0 0.0
  %46 = vmatpush1.msra.mxu0 %v32
  %47 = vmatprep.subr.mxu0 0.0
  %48 = vmatpush1.msra.mxu0 %v31
  %49 = vmatprep.subr.mxu0 0.0
  %50 = vmatpush1.msra.mxu0 %v30
  %51 = vmatprep.subr.mxu0 0.0
  %52 = vmatpush1.msra.mxu0 %v29
  %53 = vmatprep.subr.mxu0 0.0
  %54 = vmatpush1.msra.mxu0 %v28
  %55 = vmatprep.subr.mxu0 0.0
  %56 = vmatpush1.msra.mxu0 %v27
  %57 = vmatprep.subr.mxu0 0.0
  %58 = vmatpush1.msra.mxu0 %v26
  %59 = vmatprep.subr.mxu0 0.0
  %60 = vmatpush1.msra.mxu0 %v25
  %61 = vmatprep.subr.mxu0 0.0
  %62 = vmatpush1.msra.mxu0 %v24
  %63 = vmatprep.subr.mxu0 0.0
  %64 = vmatpush1.msra.mxu0 %v23
  %65 = vmatprep.subr.mxu0 0.0
  %66 = vmatpush1.msra.mxu0 %v22
  %67 = vmatprep.subr.mxu0 0.0
  %68 = vmatpush1.msra.mxu0 %v21
  %69 = vmatprep.subr.mxu0 0.0
  %70 = vmatpush2.msra.mxu0 0.0
  %71 = vmatprep.subr.mxu0 0.0
  %72 = vmatpush2.msra.mxu0 0.0
  %73 = vmatprep.subr.mxu0 0.0
  %74 = vmatpush2.msra.mxu0 0.0
  %75 = vmatprep.subr.mxu0 0.0
  %76 = vmatpush2.msra.mxu0 0.0
  %77 = vmatprep.subr.mxu0 0.0
  %78 = vmatpush2.msra.mxu0 0.0
  %79 = vmatprep.subr.mxu0 0.0
  %80 = vmatpush2.msra.mxu0 0.0
  %81 = vmatprep.subr.mxu0 0.0
  %82 = vmatpush2.msra.mxu0 0.0
  %83 = vmatprep.subr.mxu0 0.0
  %84 = vmatpush2.msra.mxu0 0.0
  %85 = vmatprep.subr.mxu0 0.0
  %86 = vmatpush2.msra.mxu0 0.0
  %87 = vmatprep.subr.mxu0 0.0
  %88 = vmatpush2.msra.mxu0 0.0
  %89 = vmatprep.subr.mxu0 0.0
  %90 = vmatpush2.msra.mxu0 0.0
  %91 = vmatprep.subr.mxu0 0.0
  %92 = vmatpush2.msra.mxu0 0.0
  %93 = vmatprep.subr.mxu0 0.0
  %94 = vmatpush2.msra.mxu0 0.0
  %95 = vmatprep.subr.mxu0 0.0
  %96 = vmatpush2.msra.mxu0 0.0
  %97 = vmatprep.subr.mxu0 0.0
  %98 = vmatpush2.msra.mxu0 0.0
  %99 = vmatprep.subr.mxu0 0.0
  %100 = vmatpush2.msra.mxu0 0.0
  %101 = vmatprep.mubr.f32.mxu0 0.0
  %102 = vmatmul.mubr.f32.gmra.mxu0 %v20
  %v103 = vpop.f32.mrf.mxu0
  %v104 = vadd.f32 0.0, %v103
  %v105 = vpop.f32.mrf.mxu0
  %106 = vdwg.mxu0
  %v107 = vadd.f32 %v19, %v104
  %108 = vst [vmem:[#allocation2] sm:$0xff] %v107
  // Predicated region
  $region18: #{_lambda_.7} parent=0 // pred_check
    %p109 = pneg %p14
  $region19: #{_lambda_.7} parent=0 // pred_check_branch
    %111 = sbr.rel (%p109) target = $region21
  $region20: #{_lambda_.7} parent=0 // pred_region
    %v112 = vld [vmem:[#allocation2] sm:$0xff]
    %v113 = vld [vmem:[%s2] sm:$0x1]
    %v115 = vlaneseq
    %v116 = vshrl.u32 %v115, 7
    %v117 = vsub.s32 0, %v116
    %v118 = vrot.slane %v113, %v117
    %v120 = vadd.f32 %v112, %v118
    %121 = vst [vmem:[%s3] sm:$0xff] %v120
  $region21: #{_lambda_.7} parent=0 // pred_fallthru
    _
  // Predicated region
  $region22: #{_lambda_.7} parent=0 // pred_check
    _
  $region23: #{_lambda_.7} parent=0 // pred_check_branch
    %123 = sbr.rel (0) target = $region25
  $region24: #{_lambda_.7} parent=0 // pred_region
    _
  $region25: #{_lambda_.7} parent=0 // pred_fallthru
    _
  // Predicated region
  $region26: #{_lambda_.7} parent=0 // pred_check
    _
  $region27: #{_lambda_.7} parent=0 // pred_check_branch
    %125 = sbr.rel (0) target = $region29
  $region28: #{_lambda_.7} parent=0 // pred_region
    _
  $region29: #{_lambda_.7} parent=0 // pred_fallthru
    _

</llo_original>
